<compile_context>
chip_gen: v7x
topology: tpu7x:2x2x1
jax: 0.10.0
libtpu: 0.0.40
codegen_flags: <defaults>
</compile_context>

<pallas_src>
import functools

import jax
import jax.numpy as jnp
from jax.experimental import pallas as pl
from jax.experimental.pallas import tpu as pltpu


def _pointnet_kernel(x_ref, w1_ref, b1_ref, w2_ref, b2_ref, w3_ref, b3_ref,
                     out_ref, *, n_points, tile_n):
    # x_ref:   (1, TN, 3)  one (batch, point-tile) block per grid step, f32
    # w1/b1:   (3, 64), (1, 64)        f32, BN-folded
    # w2/b2:   (64, 128), (1, 128)     w2 bf16, b2 f32
    # w3/b3:   (128, 1024), (1, 1024)  w3 bf16, b3 f32
    # out_ref: (1, 1, 1024)  resident running-max accumulator / final output
    n = pl.program_id(1)
    last = pl.num_programs(1) - 1

    @pl.when(n == 0)
    def _init():
        out_ref[...] = jnp.full(out_ref.shape, -jnp.inf, out_ref.dtype)

    x = x_ref[0]  # (TN, 3) f32

    # Layer 1: K=3 contraction -> three VPU FMAs (MXU would be ~98% padding).
    w1 = w1_ref[...]  # (3, 64)
    h1 = (x[:, 0:1] * w1[0:1, :]
          + x[:, 1:2] * w1[1:2, :]
          + x[:, 2:3] * w1[2:3, :])
    h1 = jnp.maximum(h1 + b1_ref[...], 0.0)                       # (TN, 64)

    # Layers 2/3: bf16 MXU matmuls, f32 accumulation.
    h2 = jnp.dot(h1.astype(jnp.bfloat16), w2_ref[...],
                 preferred_element_type=jnp.float32)
    h2 = jnp.maximum(h2 + b2_ref[...], 0.0)                       # (TN, 128)

    h3 = jnp.dot(h2.astype(jnp.bfloat16), w3_ref[...],
                 preferred_element_type=jnp.float32)              # (TN, 1024)
    # b3 is added after the max-reduction (last-tile epilogue below).

    def _update(tile):
        out_ref[...] = jnp.maximum(
            out_ref[...],
            jnp.max(tile, axis=0, keepdims=True).reshape(1, 1, -1))

    if n_points % tile_n == 0:
        # Static: no padded rows exist anywhere -> no mask at all.
        _update(h3)
    else:
        @pl.when(n != last)
        def _full_tile():
            _update(h3)

        @pl.when(n == last)  # only the last (partial) tile pays for the mask
        def _masked_tile():
            row = jax.lax.broadcasted_iota(jnp.int32, (tile_n, 1), 0)
            valid = row < (n_points - n * tile_n)
            _update(jnp.where(valid, h3, -jnp.inf))

    @pl.when(n == last)
    def _epilogue():
        # max(h3 + b3) == max(h3) + b3 (per-channel constant, no ReLU here).
        out_ref[...] = out_ref[...] + b3_ref[...].reshape(1, 1, -1)


def _round_up(v, m):
    return ((v + m - 1) // m) * m


@functools.partial(jax.jit, static_argnames=("tile_n",))
def pointnet_feat(x_ncw, w1, b1, w2, b2, w3, b3, *, tile_n=1024):
    """x_ncw: (B, 3, N) float32, PyTorch NCW layout. Returns (B, 1024) f32."""
    B, C, N = x_ncw.shape
    assert C == 3

    # Effective point-tile: multiple of 128, no larger than the rounded-up N.
    tn = min(_round_up(tile_n, 128), _round_up(N, 128))
    n_tiles = pl.cdiv(N, tn)
    n_pad = n_tiles * tn

    x = jnp.transpose(x_ncw, (0, 2, 1))        # (B, N, 3) channels-last
    if n_pad != N:                              # zero-pad; masked in-kernel
        x = jnp.pad(x, ((0, 0), (0, n_pad - N), (0, 0)))

    # bf16 weights for the MXU layers (also halves their VMEM footprint).
    w2b = w2.astype(jnp.bfloat16)
    w3b = w3.astype(jnp.bfloat16)

    kernel = functools.partial(_pointnet_kernel, n_points=N, tile_n=tn)

    flops = 2 * B * N * (3 * 64 + 64 * 128 + 128 * 1024)
    bytes_accessed = (x.size * 4 + w1.size * 4 + b1.size * 4
                      + w2b.size * 2 + b2.size * 4
                      + w3b.size * 2 + b3.size * 4 + B * 1024 * 4)

    full = lambda b, n: (0, 0)  # weights/biases: single un-tiled block

    out = pl.pallas_call(
        kernel,
        out_shape=jax.ShapeDtypeStruct((B, 1, 1024), jnp.float32),
        grid_spec=pltpu.PrefetchScalarGridSpec(
            num_scalar_prefetch=0,
            grid=(B, n_tiles),
            in_specs=[
                pl.BlockSpec((1, tn, 3), lambda b, n: (b, n, 0)),
                pl.BlockSpec((3, 64), full),
                pl.BlockSpec((1, 64), full),
                pl.BlockSpec((64, 128), full),
                pl.BlockSpec((1, 128), full),
                pl.BlockSpec((128, 1024), full),
                pl.BlockSpec((1, 1024), full),
            ],
            out_specs=pl.BlockSpec((1, 1, 1024), lambda b, n: (b, 0, 0)),
        ),
        compiler_params=pltpu.CompilerParams(
            dimension_semantics=("parallel", "arbitrary"),
            vmem_limit_bytes=32 * 1024 * 1024),
        cost_estimate=pl.CostEstimate(
            flops=flops, transcendentals=0, bytes_accessed=bytes_accessed),
    )(x, w1, b1, w2b, b2, w3b, b3)
    return out.reshape(B, 1024)


def _init_params(key):
    """Deterministic synthetic params matching PointNetfeat.__init__ shapes."""
    dims = [(3, 64), (64, 128), (128, 1024)]
    params = []
    for i, (cin, cout) in enumerate(dims):
        k = jax.random.fold_in(key, i)
        kw, kb, kg, kbe, km, kv = jax.random.split(k, 6)
        # Conv1d(cin, cout, 1): weight (cout, cin, 1), bias (cout,)
        w = jax.random.normal(kw, (cout, cin), jnp.float32) * 0.1
        b = jax.random.normal(kb, (cout,), jnp.float32) * 0.1
        # BatchNorm1d(cout) eval-mode params
        gamma = 1.0 + 0.1 * jax.random.normal(kg, (cout,), jnp.float32)
        beta = 0.1 * jax.random.normal(kbe, (cout,), jnp.float32)
        mu = 0.1 * jax.random.normal(km, (cout,), jnp.float32)
        var = 0.5 + jnp.abs(jax.random.normal(kv, (cout,), jnp.float32))
        eps = 1e-5
        scale = gamma / jnp.sqrt(var + eps)
        w_eff = (w * scale[:, None]).T              # (cin, cout) channels-last
        b_eff = ((b - mu) * scale + beta)[None, :]  # (1, cout)
        params.append((w_eff, b_eff))
    (w1, b1), (w2, b2), (w3, b3) = params
    return w1, b1, w2, b2, w3, b3


def _reference(x_ncw, w1, b1, w2, b2, w3, b3):
    """Pure-JAX f32 reference of the eval-mode PointNetfeat forward."""
    x = jnp.transpose(x_ncw, (0, 2, 1))
    h1 = jnp.maximum(x @ w1 + b1, 0.0)
    h2 = jnp.maximum(h1 @ w2 + b2, 0.0)
    h3 = h2 @ w3 + b3
    return jnp.max(h3, axis=1)


if __name__ == "__main__":
    key = jax.random.PRNGKey(0)
    kx, kp = jax.random.split(key)
    params = _init_params(kp)

    # Small shapes:
    #   (2,128) default tile -> single exact tile, mask statically elided
    #   (2,300) default tile -> single padded tile, masked epilogue
    #   (2,300) tile_n=128   -> 3 tiles, resident-output accumulation + mask
    cases = [((2, 128), None), ((2, 300), None), ((2, 300), 128)]
    for (B, N), tn in cases:
        x = jax.random.normal(jax.random.fold_in(kx, N), (B, 3, N),
                              jnp.float32)
        if tn is None:
            out = pointnet_feat(x, *params)
        else:
            out = pointnet_feat(x, *params, tile_n=tn)
        out = jax.block_until_ready(out)
        ref = _reference(x, *params)
        assert out.shape == (B, 1024), out.shape
        # bf16 matmuls with f32 accumulation vs f32 reference -> loose tol.
        assert jnp.allclose(out, ref, atol=5e-2, rtol=5e-2), \
            "mismatch vs reference"

    print("KERNEL_OK")
</pallas_src>

<mosaic_0001>
module attributes {stable_mosaic.version = 11 : i64} {
  func.func @_pointnet_kernel(%arg0: i32, %arg1: i32, %arg2: memref<1x128x3xf32, #tpu.memory_space<vmem>>, %arg3: memref<3x64xf32, #tpu.memory_space<vmem>>, %arg4: memref<1x64xf32, #tpu.memory_space<vmem>>, %arg5: memref<64x128xbf16, #tpu.memory_space<vmem>>, %arg6: memref<1x128xf32, #tpu.memory_space<vmem>>, %arg7: memref<128x1024xbf16, #tpu.memory_space<vmem>>, %arg8: memref<1x1024xf32, #tpu.memory_space<vmem>>, %arg9: memref<1x1x1024xf32, #tpu.memory_space<vmem>>) attributes {dimension_semantics = [#tpu.dimension_semantics<parallel>, #tpu.dimension_semantics<arbitrary>], iteration_bounds = array<i64: 2, 1>, scalar_prefetch = 0 : i64, scratch_operands = 0 : i64, tpu.core_type = #tpu.core_type<tc>, window_params = [{transform_indices = @transform_0, window_bounds = array<i64: 1, 128, 3>}, {pipeline_mode = #tpu.pipeline_mode<synchronous>, transform_indices = @transform_1, window_bounds = array<i64: 3, 64>}, {pipeline_mode = #tpu.pipeline_mode<synchronous>, transform_indices = @transform_2, window_bounds = array<i64: 1, 64>}, {pipeline_mode = #tpu.pipeline_mode<synchronous>, transform_indices = @transform_3, window_bounds = array<i64: 64, 128>}, {pipeline_mode = #tpu.pipeline_mode<synchronous>, transform_indices = @transform_4, window_bounds = array<i64: 1, 128>}, {pipeline_mode = #tpu.pipeline_mode<synchronous>, transform_indices = @transform_5, window_bounds = array<i64: 128, 1024>}, {pipeline_mode = #tpu.pipeline_mode<synchronous>, transform_indices = @transform_6, window_bounds = array<i64: 1, 1024>}, {transform_indices = @transform_7, window_bounds = array<i64: 1, 1, 1024>}]} {
    %c0_i32 = arith.constant 0 : i32
    %0 = arith.cmpi eq, %arg1, %c0_i32 : i32
    %1 = arith.extui %0 : i1 to i32
    %c0_i32_0 = arith.constant 0 : i32
    %2 = arith.cmpi ne, %1, %c0_i32_0 : i32
    scf.if %2 {
      %cst_25 = arith.constant 0xFF800000 : f32
      %48 = vector.broadcast %cst_25 : f32 to vector<1x1x1024xf32>
      %c0_26 = arith.constant 0 : index
      %c0_27 = arith.constant 0 : index
      %c0_28 = arith.constant 0 : index
      %49 = vector.load %arg9[%c0_26, %c0_27, %c0_28] : memref<1x1x1024xf32, #tpu.memory_space<vmem>>, vector<1x1x1024xf32>
      tpu.vector_store %arg9[%c0_26, %c0_27, %c0_28], %48 {strides = array<i32>} : memref<1x1x1024xf32, #tpu.memory_space<vmem>>, vector<1x1x1024xf32>,
    } else {
    }
    %c0 = arith.constant 0 : index
    %c0_1 = arith.constant 0 : index
    %c0_2 = arith.constant 0 : index
    %3 = vector.load %arg2[%c0, %c0_1, %c0_2] : memref<1x128x3xf32, #tpu.memory_space<vmem>>, vector<1x128x3xf32>
    %4 = vector.shape_cast %3 : vector<1x128x3xf32> to vector<128x3xf32>
    %c0_3 = arith.constant 0 : index
    %c0_4 = arith.constant 0 : index
    %5 = vector.load %arg3[%c0_3, %c0_4] : memref<3x64xf32, #tpu.memory_space<vmem>>, vector<3x64xf32>
    %6 = vector.extract_strided_slice %4 {offsets = [0, 0], sizes = [128, 1], strides = [1, 1]} : vector<128x3xf32> to vector<128x1xf32>
    %7 = vector.extract_strided_slice %5 {offsets = [0, 0], sizes = [1, 64], strides = [1, 1]} : vector<3x64xf32> to vector<1x64xf32>
    %8 = vector.broadcast %6 : vector<128x1xf32> to vector<128x64xf32>
    %9 = vector.broadcast %7 : vector<1x64xf32> to vector<128x64xf32>
    %10 = arith.mulf %8, %9 : vector<128x64xf32>
    %11 = vector.extract_strided_slice %4 {offsets = [0, 1], sizes = [128, 1], strides = [1, 1]} : vector<128x3xf32> to vector<128x1xf32>
    %12 = vector.extract_strided_slice %5 {offsets = [1, 0], sizes = [1, 64], strides = [1, 1]} : vector<3x64xf32> to vector<1x64xf32>
    %13 = vector.broadcast %11 : vector<128x1xf32> to vector<128x64xf32>
    %14 = vector.broadcast %12 : vector<1x64xf32> to vector<128x64xf32>
    %15 = arith.mulf %13, %14 : vector<128x64xf32>
    %16 = arith.addf %10, %15 : vector<128x64xf32>
    %17 = vector.extract_strided_slice %4 {offsets = [0, 2], sizes = [128, 1], strides = [1, 1]} : vector<128x3xf32> to vector<128x1xf32>
    %18 = vector.extract_strided_slice %5 {offsets = [2, 0], sizes = [1, 64], strides = [1, 1]} : vector<3x64xf32> to vector<1x64xf32>
    %19 = vector.broadcast %17 : vector<128x1xf32> to vector<128x64xf32>
    %20 = vector.broadcast %18 : vector<1x64xf32> to vector<128x64xf32>
    %21 = arith.mulf %19, %20 : vector<128x64xf32>
    %22 = arith.addf %16, %21 : vector<128x64xf32>
    %c0_5 = arith.constant 0 : index
    %c0_6 = arith.constant 0 : index
    %23 = vector.load %arg4[%c0_5, %c0_6] : memref<1x64xf32, #tpu.memory_space<vmem>>, vector<1x64xf32>
    %24 = vector.broadcast %23 : vector<1x64xf32> to vector<128x64xf32>
    %25 = arith.addf %22, %24 : vector<128x64xf32>
    %cst = arith.constant 0.000000e+00 : f32
    %26 = vector.broadcast %cst : f32 to vector<128x64xf32>
    %27 = arith.maximumf %25, %26 : vector<128x64xf32>
    %28 = arith.truncf %27 : vector<128x64xf32> to vector<128x64xbf16>
    %c0_7 = arith.constant 0 : index
    %c0_8 = arith.constant 0 : index
    %29 = vector.load %arg5[%c0_7, %c0_8] : memref<64x128xbf16, #tpu.memory_space<vmem>>, vector<64x128xbf16>
    %cst_9 = arith.constant dense<0.000000e+00> : vector<128x128xf32>
    %30 = tpu.matmul %28, %29, %cst_9 {dimension_numbers = #tpu.dot_dimension_numbers<[1], [0], [0], [1], [0, 0, 1, 1], [], []>} : vector<128x64xbf16>, vector<64x128xbf16>, vector<128x128xf32> -> vector<128x128xf32>
    %c0_10 = arith.constant 0 : index
    %c0_11 = arith.constant 0 : index
    %31 = vector.load %arg6[%c0_10, %c0_11] : memref<1x128xf32, #tpu.memory_space<vmem>>, vector<1x128xf32>
    %32 = vector.broadcast %31 : vector<1x128xf32> to vector<128x128xf32>
    %33 = arith.addf %30, %32 : vector<128x128xf32>
    %cst_12 = arith.constant 0.000000e+00 : f32
    %34 = vector.broadcast %cst_12 : f32 to vector<128x128xf32>
    %35 = arith.maximumf %33, %34 : vector<128x128xf32>
    %36 = arith.truncf %35 : vector<128x128xf32> to vector<128x128xbf16>
    %c0_13 = arith.constant 0 : index
    %c0_14 = arith.constant 0 : index
    %37 = vector.load %arg7[%c0_13, %c0_14] : memref<128x1024xbf16, #tpu.memory_space<vmem>>, vector<128x1024xbf16>
    %cst_15 = arith.constant dense<0.000000e+00> : vector<128x1024xf32>
    %38 = tpu.matmul %36, %37, %cst_15 {dimension_numbers = #tpu.dot_dimension_numbers<[1], [0], [0], [1], [0, 0, 1, 1], [], []>} : vector<128x128xbf16>, vector<128x1024xbf16>, vector<128x1024xf32> -> vector<128x1024xf32>
    %c0_16 = arith.constant 0 : index
    %c0_17 = arith.constant 0 : index
    %c0_18 = arith.constant 0 : index
    %39 = vector.load %arg9[%c0_16, %c0_17, %c0_18] : memref<1x1x1024xf32, #tpu.memory_space<vmem>>, vector<1x1x1024xf32>
    %cst_19 = arith.constant dense<0xFF800000> : vector<1024xf32>
    %40 = vector.multi_reduction <maximumf>, %38, %cst_19 [0] : vector<128x1024xf32> to vector<1024xf32>
    %41 = vector.shape_cast %40 : vector<1024xf32> to vector<1x1024xf32>
    %42 = vector.shape_cast %41 : vector<1x1024xf32> to vector<1x1x1024xf32>
    %43 = arith.maximumf %39, %42 : vector<1x1x1024xf32>
    %c0_20 = arith.constant 0 : index
    %c0_21 = arith.constant 0 : index
    %c0_22 = arith.constant 0 : index
    %44 = vector.load %arg9[%c0_20, %c0_21, %c0_22] : memref<1x1x1024xf32, #tpu.memory_space<vmem>>, vector<1x1x1024xf32>
    tpu.vector_store %arg9[%c0_20, %c0_21, %c0_22], %43 {strides = array<i32>} : memref<1x1x1024xf32, #tpu.memory_space<vmem>>, vector<1x1x1024xf32>,
    %c0_i32_23 = arith.constant 0 : i32
    %45 = arith.cmpi eq, %arg1, %c0_i32_23 : i32
    %46 = arith.extui %45 : i1 to i32
    %c0_i32_24 = arith.constant 0 : i32
    %47 = arith.cmpi ne, %46, %c0_i32_24 : i32
    scf.if %47 {
      %c0_25 = arith.constant 0 : index
      %c0_26 = arith.constant 0 : index
      %c0_27 = arith.constant 0 : index
      %48 = vector.load %arg9[%c0_25, %c0_26, %c0_27] : memref<1x1x1024xf32, #tpu.memory_space<vmem>>, vector<1x1x1024xf32>
      %c0_28 = arith.constant 0 : index
      %c0_29 = arith.constant 0 : index
      %49 = vector.load %arg8[%c0_28, %c0_29] : memref<1x1024xf32, #tpu.memory_space<vmem>>, vector<1x1024xf32>
      %50 = vector.shape_cast %49 : vector<1x1024xf32> to vector<1x1x1024xf32>
      %51 = arith.addf %48, %50 : vector<1x1x1024xf32>
      %c0_30 = arith.constant 0 : index
      %c0_31 = arith.constant 0 : index
      %c0_32 = arith.constant 0 : index
      %52 = vector.load %arg9[%c0_30, %c0_31, %c0_32] : memref<1x1x1024xf32, #tpu.memory_space<vmem>>, vector<1x1x1024xf32>
      tpu.vector_store %arg9[%c0_30, %c0_31, %c0_32], %51 {strides = array<i32>} : memref<1x1x1024xf32, #tpu.memory_space<vmem>>, vector<1x1x1024xf32>,
    } else {
    }
    return
  }
  func.func @transform_0(%arg0: i32, %arg1: i32) -> (i32, i32, i32) {
    %c0_i32 = arith.constant 0 : i32
    %c0_i32_0 = arith.constant 0 : i32
    return %arg0, %arg1, %c0_i32 : i32, i32, i32
  }
  func.func @transform_1(%arg0: i32, %arg1: i32) -> (i32, i32) {
    %c0_i32 = arith.constant 0 : i32
    %c0_i32_0 = arith.constant 0 : i32
    %c0_i32_1 = arith.constant 0 : i32
    return %c0_i32, %c0_i32_0 : i32, i32
  }
  func.func @transform_2(%arg0: i32, %arg1: i32) -> (i32, i32) {
    %c0_i32 = arith.constant 0 : i32
    %c0_i32_0 = arith.constant 0 : i32
    %c0_i32_1 = arith.constant 0 : i32
    return %c0_i32, %c0_i32_0 : i32, i32
  }
  func.func @transform_3(%arg0: i32, %arg1: i32) -> (i32, i32) {
    %c0_i32 = arith.constant 0 : i32
    %c0_i32_0 = arith.constant 0 : i32
    %c0_i32_1 = arith.constant 0 : i32
    return %c0_i32, %c0_i32_0 : i32, i32
  }
  func.func @transform_4(%arg0: i32, %arg1: i32) -> (i32, i32) {
    %c0_i32 = arith.constant 0 : i32
    %c0_i32_0 = arith.constant 0 : i32
    %c0_i32_1 = arith.constant 0 : i32
    return %c0_i32, %c0_i32_0 : i32, i32
  }
  func.func @transform_5(%arg0: i32, %arg1: i32) -> (i32, i32) {
    %c0_i32 = arith.constant 0 : i32
    %c0_i32_0 = arith.constant 0 : i32
    %c0_i32_1 = arith.constant 0 : i32
    return %c0_i32, %c0_i32_0 : i32, i32
  }
  func.func @transform_6(%arg0: i32, %arg1: i32) -> (i32, i32) {
    %c0_i32 = arith.constant 0 : i32
    %c0_i32_0 = arith.constant 0 : i32
    %c0_i32_1 = arith.constant 0 : i32
    return %c0_i32, %c0_i32_0 : i32, i32
  }
  func.func @transform_7(%arg0: i32, %arg1: i32) -> (i32, i32, i32) {
    %c0_i32 = arith.constant 0 : i32
    %c0_i32_0 = arith.constant 0 : i32
    %c0_i32_1 = arith.constant 0 : i32
    return %arg0, %c0_i32, %c0_i32_0 : i32, i32, i32
  }
}

</mosaic_0001>

<llo_original>
// kernel: pointnet_feat.1
$region0: #{pointnet_feat.1}
  #allocation0 [shape = 'u32[]', space=smem, size = 0x4, offset = 0x4, fixed_abs, tag = 'smem constant byte address 0x4 - core index']
  #allocation1 [shape = 'u32[144,128]{1,0:T(1,128)}', space=vmem, size = 0x12000, scoped, tag = 'internal scratch']
  %s0 = inlined_call_operand.vmem [shape: f32[2,128,3], index: 0, kind: input, shape index: {}]
  %s1 = inlined_call_operand.vmem [shape: f32[3,64], index: 1, kind: input, shape index: {}]
  %s2 = inlined_call_operand.vmem [shape: f32[1,64], index: 2, kind: input, shape index: {}]
  %s3 = inlined_call_operand.vmem [shape: bf16[64,128], index: 3, kind: input, shape index: {}]
  %s4 = inlined_call_operand.vmem [shape: f32[1,128], index: 4, kind: input, shape index: {}]
  %s5 = inlined_call_operand.vmem [shape: bf16[128,1024], index: 5, kind: input, shape index: {}]
  %s6 = inlined_call_operand.vmem [shape: f32[1,1024], index: 6, kind: input, shape index: {}]
  %s7 = inlined_call_operand.vmem [shape: f32[2,1,1024], index: 7, kind: output, shape index: {}]
  %s8 = sld [smem:[#allocation0]]
  $region69: #{pointnet_feat.1} parent=0
    _
  %s10 = ssub.s32 1, %s8
  %s11 = scalar_select 0, %s10, %s8
  loop: start=0, step=1, limit=4
  $region2: #{pointnet_feat.1} parent=0 // loop_pre_header
    _
  $region3: #{pointnet_feat.1} parent=0 // loop_header
    %s13 = sphi 0, %s17
    %p14 = scmp.ge.s32.totalorder %s13, 4
    %s20 = sphi 0, %s32
    %s21 = sphi 0, %s28
    %s22 = sphi 0, %s20
    %s23 = sphi 0, %s21
    %s24 = sphi 0, %s22
    %s25 = sphi 0, %s23
    %s37 = sphi 0, %s39
    %s40 = sphi 0, %s37
    %s41 = sphi 0, %s40
    %s57 = sphi 0, %s41
    %s61 = sphi 0, %s61
    %s63 = sphi 0, %s61
    %s64 = sphi 0, %s63
    %s78 = sphi 0, %s64
    %s82 = sphi 0, %s82
    %s84 = sphi 0, %s82
    %s85 = sphi 0, %s84
    %s99 = sphi 0, %s85
    %s103 = sphi 0, %s103
    %s105 = sphi 0, %s103
    %s106 = sphi 0, %s105
    %s120 = sphi 0, %s106
    %s124 = sphi 0, %s124
    %s126 = sphi 0, %s124
    %s127 = sphi 0, %s126
    %s141 = sphi 0, %s127
    %s145 = sphi 0, %s145
    %s147 = sphi 0, %s145
    %s148 = sphi 0, %s147
    %s162 = sphi 0, %s148
    %s166 = sphi 0, %s166
    %s168 = sphi 0, %s166
    %s169 = sphi 0, %s168
    %s183 = sphi 0, %s169
    %s189 = sphi 0, %s191
    %s192 = sphi 0, %s189
    %s193 = sphi 0, %s192
    %s209 = sphi 0, %s193
  $region4: #{pointnet_feat.1} parent=0 // loop_header_branch
    %16 = sbr.rel (%p14) target = $region8
  $region5: #{pointnet_feat.1} parent=0 // loop_body
    %s18 = ssub.s32 %s13, 1
    %s19 = ssub.s32 %s13, 2
    %s26 = sadd.s32 1, %s21
    %p27 = scmp.ge.s32.totalorder %s26, 1
    %s28 = scalar_select %p27, 0, %s26
    %s29 = sadd.s32 1, %s20
    %s30 = scalar_select %p27, %s29, %s20
    %p31 = scmp.ge.s32.totalorder %s30, 2
    %s32 = scalar_select %p31, 0, %s30
    %s33 = ssub.s32 %s20, %s32
    %s34 = ssub.s32 %s21, %s28
    %s35 = sor.u32 %s33, %s34
    %p36 = scmp.eq.s32.totalorder %s35, 0
    %s38 = sadd.s32 %s37, 1
    %s39 = scalar_select %p36, %s37, %s38
    %p42 = pneg %p36
    %p43 = scmp.eq.s32.totalorder %s13, 1
    %p44 = por %p42, %p43
    %p45 = scmp.ne.s32.totalorder %s37, %s40
    %p46 = scmp.eq.s32.totalorder %s13, 0
    %p47 = por %p45, %p46
    %p48 = scmp.ne.s32.totalorder %s37, %s40
    %p49 = scmp.eq.s32.totalorder %s18, 1
    %p50 = por %p48, %p49
    %p51 = scmp.ne.s32.totalorder %s40, %s41
    %p52 = scmp.eq.s32.totalorder %s18, 0
    %p53 = por %p51, %p52
    %p54 = scmp.ne.s32.totalorder %s40, %s41
    %p55 = scmp.eq.s32.totalorder %s19, 1
    %p56 = por %p54, %p55
    %p58 = scmp.ne.s32.totalorder %s41, %s57
    %p59 = scmp.eq.s32.totalorder %s19, 0
    %p60 = por %p58, %p59
    %s62 = sadd.s32 %s61, 1
    %p65 = scmp.eq.s32.totalorder %s13, 1
    %p66 = scmp.ne.s32.totalorder %s61, %s63
    %p67 = scmp.eq.s32.totalorder %s13, 0
    %p68 = por %p66, %p67
    %p69 = scmp.ne.s32.totalorder %s61, %s63
    %p70 = scmp.eq.s32.totalorder %s18, 1
    %p71 = por %p69, %p70
    %p72 = scmp.ne.s32.totalorder %s63, %s64
    %p73 = scmp.eq.s32.totalorder %s18, 0
    %p74 = por %p72, %p73
    %p75 = scmp.ne.s32.totalorder %s63, %s64
    %p76 = scmp.eq.s32.totalorder %s19, 1
    %p77 = por %p75, %p76
    %p79 = scmp.ne.s32.totalorder %s64, %s78
    %p80 = scmp.eq.s32.totalorder %s19, 0
    %p81 = por %p79, %p80
    %s83 = sadd.s32 %s82, 1
    %p86 = scmp.eq.s32.totalorder %s13, 1
    %p87 = scmp.ne.s32.totalorder %s82, %s84
    %p88 = scmp.eq.s32.totalorder %s13, 0
    %p89 = por %p87, %p88
    %p90 = scmp.ne.s32.totalorder %s82, %s84
    %p91 = scmp.eq.s32.totalorder %s18, 1
    %p92 = por %p90, %p91
    %p93 = scmp.ne.s32.totalorder %s84, %s85
    %p94 = scmp.eq.s32.totalorder %s18, 0
    %p95 = por %p93, %p94
    %p96 = scmp.ne.s32.totalorder %s84, %s85
    %p97 = scmp.eq.s32.totalorder %s19, 1
    %p98 = por %p96, %p97
    %p100 = scmp.ne.s32.totalorder %s85, %s99
    %p101 = scmp.eq.s32.totalorder %s19, 0
    %p102 = por %p100, %p101
    %s104 = sadd.s32 %s103, 1
    %p107 = scmp.eq.s32.totalorder %s13, 1
    %p108 = scmp.ne.s32.totalorder %s103, %s105
    %p109 = scmp.eq.s32.totalorder %s13, 0
    %p110 = por %p108, %p109
    %p111 = scmp.ne.s32.totalorder %s103, %s105
    %p112 = scmp.eq.s32.totalorder %s18, 1
    %p113 = por %p111, %p112
    %p114 = scmp.ne.s32.totalorder %s105, %s106
    %p115 = scmp.eq.s32.totalorder %s18, 0
    %p116 = por %p114, %p115
    %p117 = scmp.ne.s32.totalorder %s105, %s106
    %p118 = scmp.eq.s32.totalorder %s19, 1
    %p119 = por %p117, %p118
    %p121 = scmp.ne.s32.totalorder %s106, %s120
    %p122 = scmp.eq.s32.totalorder %s19, 0
    %p123 = por %p121, %p122
    %s125 = sadd.s32 %s124, 1
    %p128 = scmp.eq.s32.totalorder %s13, 1
    %p129 = scmp.ne.s32.totalorder %s124, %s126
    %p130 = scmp.eq.s32.totalorder %s13, 0
    %p131 = por %p129, %p130
    %p132 = scmp.ne.s32.totalorder %s124, %s126
    %p133 = scmp.eq.s32.totalorder %s18, 1
    %p134 = por %p132, %p133
    %p135 = scmp.ne.s32.totalorder %s126, %s127
    %p136 = scmp.eq.s32.totalorder %s18, 0
    %p137 = por %p135, %p136
    %p138 = scmp.ne.s32.totalorder %s126, %s127
    %p139 = scmp.eq.s32.totalorder %s19, 1
    %p140 = por %p138, %p139
    %p142 = scmp.ne.s32.totalorder %s127, %s141
    %p143 = scmp.eq.s32.totalorder %s19, 0
    %p144 = por %p142, %p143
    %s146 = sadd.s32 %s145, 1
    %p149 = scmp.eq.s32.totalorder %s13, 1
    %p150 = scmp.ne.s32.totalorder %s145, %s147
    %p151 = scmp.eq.s32.totalorder %s13, 0
    %p152 = por %p150, %p151
    %p153 = scmp.ne.s32.totalorder %s145, %s147
    %p154 = scmp.eq.s32.totalorder %s18, 1
    %p155 = por %p153, %p154
    %p156 = scmp.ne.s32.totalorder %s147, %s148
    %p157 = scmp.eq.s32.totalorder %s18, 0
    %p158 = por %p156, %p157
    %p159 = scmp.ne.s32.totalorder %s147, %s148
    %p160 = scmp.eq.s32.totalorder %s19, 1
    %p161 = por %p159, %p160
    %p163 = scmp.ne.s32.totalorder %s148, %s162
    %p164 = scmp.eq.s32.totalorder %s19, 0
    %p165 = por %p163, %p164
    %s167 = sadd.s32 %s166, 1
    %p170 = scmp.eq.s32.totalorder %s13, 1
    %p171 = scmp.ne.s32.totalorder %s166, %s168
    %p172 = scmp.eq.s32.totalorder %s13, 0
    %p173 = por %p171, %p172
    %p174 = scmp.ne.s32.totalorder %s166, %s168
    %p175 = scmp.eq.s32.totalorder %s18, 1
    %p176 = por %p174, %p175
    %p177 = scmp.ne.s32.totalorder %s168, %s169
    %p178 = scmp.eq.s32.totalorder %s18, 0
    %p179 = por %p177, %p178
    %p180 = scmp.ne.s32.totalorder %s168, %s169
    %p181 = scmp.eq.s32.totalorder %s19, 1
    %p182 = por %p180, %p181
    %p184 = scmp.ne.s32.totalorder %s169, %s183
    %p185 = scmp.eq.s32.totalorder %s19, 0
    %p186 = por %p184, %p185
    %s187 = ssub.s32 %s20, %s32
    %p188 = scmp.eq.s32.totalorder %s187, 0
    %s190 = sadd.s32 %s189, 1
    %s191 = scalar_select %p188, %s189, %s190
    %p194 = pneg %p188
    %p195 = scmp.eq.s32.totalorder %s13, 1
    %p196 = por %p194, %p195
    %p197 = scmp.ne.s32.totalorder %s189, %s192
    %p198 = scmp.eq.s32.totalorder %s13, 0
    %p199 = por %p197, %p198
    %p200 = scmp.ne.s32.totalorder %s189, %s192
    %p201 = scmp.eq.s32.totalorder %s18, 1
    %p202 = por %p200, %p201
    %p203 = scmp.ne.s32.totalorder %s192, %s193
    %p204 = scmp.eq.s32.totalorder %s18, 0
    %p205 = por %p203, %p204
    %p206 = scmp.ne.s32.totalorder %s192, %s193
    %p207 = scmp.eq.s32.totalorder %s19, 1
    %p208 = por %p206, %p207
    %p210 = scmp.ne.s32.totalorder %s193, %s209
    %p211 = scmp.eq.s32.totalorder %s19, 0
    %p212 = por %p210, %p211
    %p213 = scmp.le.s32.totalorder 1, %s13
    %p214 = scmp.lt.s32.totalorder %s13, 3
    %p215 = pnand %p213, %p214
    %p216 = pneg %p215
    // Predicated region
    $region9: #{pointnet_feat.1} parent=5 // pred_check
      _
    $region10: #{pointnet_feat.1} parent=5 // pred_check_branch
      %218 = sbr.rel (%p215) target = $region12
    $region11: #{pointnet_feat.1} parent=5 // pred_region
      %s219 = ssub.s32 %s13, 1
      // Predicated region
      $region13: #{pointnet_feat.1} parent=11 // pred_check
        %p220 = pneg %p74
      $region14: #{pointnet_feat.1} parent=11 // pred_check_branch
        %222 = sbr.rel (%p220) target = $region16
      $region15: #{pointnet_feat.1} parent=11 // pred_region
        _
      $region16: #{pointnet_feat.1} parent=11 // pred_fallthru
        _
      // Predicated region
      $region17: #{pointnet_feat.1} parent=11 // pred_check
        %p223 = pneg %p95
      $region18: #{pointnet_feat.1} parent=11 // pred_check_branch
        %225 = sbr.rel (%p223) target = $region20
      $region19: #{pointnet_feat.1} parent=11 // pred_region
        _
      $region20: #{pointnet_feat.1} parent=11 // pred_fallthru
        _
      // Predicated region
      $region21: #{pointnet_feat.1} parent=11 // pred_check
        %p226 = pneg %p116
      $region22: #{pointnet_feat.1} parent=11 // pred_check_branch
        %228 = sbr.rel (%p226) target = $region24
      $region23: #{pointnet_feat.1} parent=11 // pred_region
        _
      $region24: #{pointnet_feat.1} parent=11 // pred_fallthru
        _
      // Predicated region
      $region25: #{pointnet_feat.1} parent=11 // pred_check
        %p229 = pneg %p137
      $region26: #{pointnet_feat.1} parent=11 // pred_check_branch
        %231 = sbr.rel (%p229) target = $region28
      $region27: #{pointnet_feat.1} parent=11 // pred_region
        _
      $region28: #{pointnet_feat.1} parent=11 // pred_fallthru
        _
      // Predicated region
      $region29: #{pointnet_feat.1} parent=11 // pred_check
        %p232 = pneg %p158
      $region30: #{pointnet_feat.1} parent=11 // pred_check_branch
        %234 = sbr.rel (%p232) target = $region32
      $region31: #{pointnet_feat.1} parent=11 // pred_region
        _
      $region32: #{pointnet_feat.1} parent=11 // pred_fallthru
        _
      // Predicated region
      $region33: #{pointnet_feat.1} parent=11 // pred_check
        %p235 = pneg %p179
      $region34: #{pointnet_feat.1} parent=11 // pred_check_branch
        %237 = sbr.rel (%p235) target = $region36
      $region35: #{pointnet_feat.1} parent=11 // pred_region
        _
      $region36: #{pointnet_feat.1} parent=11 // pred_fallthru
        _
    $region12: #{pointnet_feat.1} parent=5 // pred_fallthru
      _
    %p238 = scmp.lt.s32.totalorder %s13, 2
    // Predicated region
    $region37: #{pointnet_feat.1} parent=5 // pred_check
      %p239 = pneg %p238
    $region38: #{pointnet_feat.1} parent=5 // pred_check_branch
      %241 = sbr.rel (%p239) target = $region40
    $region39: #{pointnet_feat.1} parent=5 // pred_region
      // Predicated region
      $region41: #{pointnet_feat.1} parent=39 // pred_check
        %p242 = pneg %p47
      $region42: #{pointnet_feat.1} parent=39 // pred_check_branch
        %244 = sbr.rel (%p242) target = $region44
      $region43: #{pointnet_feat.1} parent=39 // pred_region
        %s245 = smul.u32 16, %s21
        %p246 = scmp.lt.s32.totalorder %s20, 1
        %s247 = scalar_select %p246, %s20, 1
        %p248 = scmp.lt.s32.totalorder %s245, 15
        %s249 = scalar_select %p248, %s245, 15
        %s250 = smul.addr %s247, 16
        %s251 = sadd.s32 %s249, %s250
        %s252 = smul.addr %s251, 8
        %s253 = scalar_lea.vmem %s0, %s252
        %s254 = smul.u32 16, %s21
      $region44: #{pointnet_feat.1} parent=39 // pred_fallthru
        _
    $region40: #{pointnet_feat.1} parent=5 // pred_fallthru
      _
    %p255 = scmp.le.s32.totalorder 1, %s13
    %p256 = scmp.lt.s32.totalorder %s13, 3
    %p257 = pnand %p255, %p256
    %p258 = pneg %p257
    // Predicated region
    $region45: #{pointnet_feat.1} parent=5 // pred_check
      _
    $region46: #{pointnet_feat.1} parent=5 // pred_check_branch
      %260 = sbr.rel (%p257) target = $region48
    $region47: #{pointnet_feat.1} parent=5 // pred_region
      %s261 = ssub.s32 %s13, 1
      %s262 = smul.u32 16, %s23
      %p263 = scmp.lt.s32.totalorder %s22, 1
      %s264 = scalar_select %p263, %s22, 1
      %p265 = scmp.lt.s32.totalorder %s262, 15
      %s266 = scalar_select %p265, %s262, 15
      %s267 = smul.addr %s264, 16
      %s268 = sadd.s32 %s266, %s267
      %s269 = smul.addr %s268, 8
      %s270 = scalar_lea.vmem %s0, %s269
      %p271 = pneg %p53
      %p272 = pneg %p50
      %p273 = pneg %p74
      %p274 = pneg %p71
      %p275 = pneg %p95
      %p276 = pneg %p92
      %p277 = pneg %p116
      %p278 = pneg %p113
      %p279 = pneg %p137
      %p280 = pneg %p134
      %p281 = pneg %p158
      %p282 = pneg %p155
      %p283 = pneg %p179
      %p284 = pneg %p176
      %p285 = pneg %p205
      %p286 = pneg %p202
      %p287 = scmp.lt.s32.totalorder %s22, 1
      %s288 = scalar_select %p287, %s22, 1
      %s289 = smul.addr %s288, 8
      %s290 = scalar_lea.vmem %s7, %s289
      %s291 = smul.u32 16, %s23
      %p292 = scmp.lt.s32.totalorder %s22, 1
      %s293 = scalar_select %p292, %s22, 1
      %p294 = scmp.lt.s32.totalorder %s291, 15
      %s295 = scalar_select %p294, %s291, 15
      %s296 = smul.addr %s293, 16
      %s297 = sadd.s32 %s295, %s296
      %s298 = smul.addr %s297, 8
      %s299 = scalar_lea.vmem %s0, %s298
      %s300 = smul.u32 16, %s23
      %p301 = scmp.lt.s32.totalorder %s22, 1
      %s302 = scalar_select %p301, %s22, 1
      %s303 = smul.addr %s302, 8
      %s304 = scalar_lea.vmem %s7, %s303
      %p306 = scmp.eq.s32.totalorder %s23, 0
      // Predicated region
      $region49: #{pointnet_feat.1} parent=47 // pred_check
        %p307 = pneg %p306
      $region50: #{pointnet_feat.1} parent=47 // pred_check_branch
        %309 = sbr.rel (%p307) target = $region52
      $region51: #{pointnet_feat.1} parent=47 // pred_region
        %310 = vst [vmem:[%s304] sm:$0xff] -inf
      $region52: #{pointnet_feat.1} parent=47 // pred_fallthru
        _
      %v311 = vld [vmem:[%s299] sm:$0xff]
      %v312 = vld [vmem:[%s299 + $0x8] sm:$0xff]
      %v313 = vld [vmem:[%s299 + $0x10] sm:$0xff]
      %v314 = vld [vmem:[%s299 + $0x18] sm:$0xff]
      %v315 = vld [vmem:[%s299 + $0x20] sm:$0xff]
      %v316 = vld [vmem:[%s299 + $0x28] sm:$0xff]
      %v317 = vld [vmem:[%s299 + $0x30] sm:$0xff]
      %v318 = vld [vmem:[%s299 + $0x38] sm:$0xff]
      %v319 = vld [vmem:[%s299 + $0x40] sm:$0xff]
      %v320 = vld [vmem:[%s299 + $0x48] sm:$0xff]
      %v321 = vld [vmem:[%s299 + $0x50] sm:$0xff]
      %v322 = vld [vmem:[%s299 + $0x58] sm:$0xff]
      %v323 = vld [vmem:[%s299 + $0x60] sm:$0xff]
      %v324 = vld [vmem:[%s299 + $0x68] sm:$0xff]
      %v325 = vld [vmem:[%s299 + $0x70] sm:$0xff]
      %v326 = vld [vmem:[%s299 + $0x78] sm:$0xff]
      %v327 = vld [vmem:[%s1] sm:$0x7]
      %329 = vset.pattern.permute.xlu0 0
      %330 = vperm.xlu0 %329, %v311
      %v331 = vpop.permute.xlu0 %330
      %334 = vset.pattern.permute.xlu0 0
      %335 = vperm.xlu0 %334, %v312
      %v336 = vpop.permute.xlu0 %335
      %339 = vset.pattern.permute.xlu0 0
      %340 = vperm.xlu0 %339, %v313
      %v341 = vpop.permute.xlu0 %340
      %344 = vset.pattern.permute.xlu0 0
      %345 = vperm.xlu0 %344, %v314
      %v346 = vpop.permute.xlu0 %345
      %349 = vset.pattern.permute.xlu0 0
      %350 = vperm.xlu0 %349, %v315
      %v351 = vpop.permute.xlu0 %350
      %354 = vset.pattern.permute.xlu0 0
      %355 = vperm.xlu0 %354, %v316
      %v356 = vpop.permute.xlu0 %355
      %359 = vset.pattern.permute.xlu0 0
      %360 = vperm.xlu0 %359, %v317
      %v361 = vpop.permute.xlu0 %360
      %364 = vset.pattern.permute.xlu0 0
      %365 = vperm.xlu0 %364, %v318
      %v366 = vpop.permute.xlu0 %365
      %369 = vset.pattern.permute.xlu0 0
      %370 = vperm.xlu0 %369, %v319
      %v371 = vpop.permute.xlu0 %370
      %374 = vset.pattern.permute.xlu0 0
      %375 = vperm.xlu0 %374, %v320
      %v376 = vpop.permute.xlu0 %375
      %379 = vset.pattern.permute.xlu0 0
      %380 = vperm.xlu0 %379, %v321
      %v381 = vpop.permute.xlu0 %380
      %384 = vset.pattern.permute.xlu0 0
      %385 = vperm.xlu0 %384, %v322
      %v386 = vpop.permute.xlu0 %385
      %389 = vset.pattern.permute.xlu0 0
      %390 = vperm.xlu0 %389, %v323
      %v391 = vpop.permute.xlu0 %390
      %394 = vset.pattern.permute.xlu0 0
      %395 = vperm.xlu0 %394, %v324
      %v396 = vpop.permute.xlu0 %395
      %399 = vset.pattern.permute.xlu0 0
      %400 = vperm.xlu0 %399, %v325
      %v401 = vpop.permute.xlu0 %400
      %404 = vset.pattern.permute.xlu0 0
      %405 = vperm.xlu0 %404, %v326
      %v406 = vpop.permute.xlu0 %405
      %v408 = vlaneseq
      %v409 = vshrl.u32 %v408, 7
      %v410 = vsub.s32 0, %v409
      %v411 = vrot.slane %v327, %v410
      %v412 = vmul.f32 %v331, %v411
      %v413 = vmul.f32 %v336, %v411
      %v414 = vmul.f32 %v341, %v411
      %v415 = vmul.f32 %v346, %v411
      %v416 = vmul.f32 %v351, %v411
      %v417 = vmul.f32 %v356, %v411
      %v418 = vmul.f32 %v361, %v411
      %v419 = vmul.f32 %v366, %v411
      %v420 = vmul.f32 %v371, %v411
      %v421 = vmul.f32 %v376, %v411
      %v422 = vmul.f32 %v381, %v411
      %v423 = vmul.f32 %v386, %v411
      %v424 = vmul.f32 %v391, %v411
      %v425 = vmul.f32 %v396, %v411
      %v426 = vmul.f32 %v401, %v411
      %v427 = vmul.f32 %v406, %v411
      %428 = vset.pattern.permute.xlu0 1
      %429 = vperm.xlu0 %428, %v311
      %v430 = vpop.permute.xlu0 %429
      %432 = vset.pattern.permute.xlu0 1
      %433 = vperm.xlu0 %432, %v312
      %v434 = vpop.permute.xlu0 %433
      %436 = vset.pattern.permute.xlu0 1
      %437 = vperm.xlu0 %436, %v313
      %v438 = vpop.permute.xlu0 %437
      %440 = vset.pattern.permute.xlu0 1
      %441 = vperm.xlu0 %440, %v314
      %v442 = vpop.permute.xlu0 %441
      %444 = vset.pattern.permute.xlu0 1
      %445 = vperm.xlu0 %444, %v315
      %v446 = vpop.permute.xlu0 %445
      %448 = vset.pattern.permute.xlu0 1
      %449 = vperm.xlu0 %448, %v316
      %v450 = vpop.permute.xlu0 %449
      %452 = vset.pattern.permute.xlu0 1
      %453 = vperm.xlu0 %452, %v317
      %v454 = vpop.permute.xlu0 %453
      %456 = vset.pattern.permute.xlu0 1
      %457 = vperm.xlu0 %456, %v318
      %v458 = vpop.permute.xlu0 %457
      %460 = vset.pattern.permute.xlu0 1
      %461 = vperm.xlu0 %460, %v319
      %v462 = vpop.permute.xlu0 %461
      %464 = vset.pattern.permute.xlu0 1
      %465 = vperm.xlu0 %464, %v320
      %v466 = vpop.permute.xlu0 %465
      %468 = vset.pattern.permute.xlu0 1
      %469 = vperm.xlu0 %468, %v321
      %v470 = vpop.permute.xlu0 %469
      %472 = vset.pattern.permute.xlu0 1
      %473 = vperm.xlu0 %472, %v322
      %v474 = vpop.permute.xlu0 %473
      %476 = vset.pattern.permute.xlu0 1
      %477 = vperm.xlu0 %476, %v323
      %v478 = vpop.permute.xlu0 %477
      %480 = vset.pattern.permute.xlu0 1
      %481 = vperm.xlu0 %480, %v324
      %v482 = vpop.permute.xlu0 %481
      %484 = vset.pattern.permute.xlu0 1
      %485 = vperm.xlu0 %484, %v325
      %v486 = vpop.permute.xlu0 %485
      %488 = vset.pattern.permute.xlu0 1
      %489 = vperm.xlu0 %488, %v326
      %v490 = vpop.permute.xlu0 %489
      %v492 = vlaneseq
      %v493 = vshrl.u32 %v492, 7
      %v494 = vsub.s32 1, %v493
      %v495 = vrot.slane %v327, %v494
      %v496 = vmul.f32 %v430, %v495
      %v497 = vmul.f32 %v434, %v495
      %v498 = vmul.f32 %v438, %v495
      %v499 = vmul.f32 %v442, %v495
      %v500 = vmul.f32 %v446, %v495
      %v501 = vmul.f32 %v450, %v495
      %v502 = vmul.f32 %v454, %v495
      %v503 = vmul.f32 %v458, %v495
      %v504 = vmul.f32 %v462, %v495
      %v505 = vmul.f32 %v466, %v495
      %v506 = vmul.f32 %v470, %v495
      %v507 = vmul.f32 %v474, %v495
      %v508 = vmul.f32 %v478, %v495
      %v509 = vmul.f32 %v482, %v495
      %v510 = vmul.f32 %v486, %v495
      %v511 = vmul.f32 %v490, %v495
      %v512 = vadd.f32 %v412, %v496
      %v513 = vadd.f32 %v413, %v497
      %v514 = vadd.f32 %v414, %v498
      %v515 = vadd.f32 %v415, %v499
      %v516 = vadd.f32 %v416, %v500
      %v517 = vadd.f32 %v417, %v501
      %v518 = vadd.f32 %v418, %v502
      %v519 = vadd.f32 %v419, %v503
      %v520 = vadd.f32 %v420, %v504
      %v521 = vadd.f32 %v421, %v505
      %v522 = vadd.f32 %v422, %v506
      %v523 = vadd.f32 %v423, %v507
      %v524 = vadd.f32 %v424, %v508
      %v525 = vadd.f32 %v425, %v509
      %v526 = vadd.f32 %v426, %v510
      %v527 = vadd.f32 %v427, %v511
      %528 = vset.pattern.permute.xlu0 2
      %529 = vperm.xlu0 %528, %v311
      %v530 = vpop.permute.xlu0 %529
      %532 = vset.pattern.permute.xlu0 2
      %533 = vperm.xlu0 %532, %v312
      %v534 = vpop.permute.xlu0 %533
      %536 = vset.pattern.permute.xlu0 2
      %537 = vperm.xlu0 %536, %v313
      %v538 = vpop.permute.xlu0 %537
      %540 = vset.pattern.permute.xlu0 2
      %541 = vperm.xlu0 %540, %v314
      %v542 = vpop.permute.xlu0 %541
      %544 = vset.pattern.permute.xlu0 2
      %545 = vperm.xlu0 %544, %v315
      %v546 = vpop.permute.xlu0 %545
      %548 = vset.pattern.permute.xlu0 2
      %549 = vperm.xlu0 %548, %v316
      %v550 = vpop.permute.xlu0 %549
      %552 = vset.pattern.permute.xlu0 2
      %553 = vperm.xlu0 %552, %v317
      %v554 = vpop.permute.xlu0 %553
      %556 = vset.pattern.permute.xlu0 2
      %557 = vperm.xlu0 %556, %v318
      %v558 = vpop.permute.xlu0 %557
      %560 = vset.pattern.permute.xlu0 2
      %561 = vperm.xlu0 %560, %v319
      %v562 = vpop.permute.xlu0 %561
      %564 = vset.pattern.permute.xlu0 2
      %565 = vperm.xlu0 %564, %v320
      %v566 = vpop.permute.xlu0 %565
      %568 = vset.pattern.permute.xlu0 2
      %569 = vperm.xlu0 %568, %v321
      %v570 = vpop.permute.xlu0 %569
      %572 = vset.pattern.permute.xlu0 2
      %573 = vperm.xlu0 %572, %v322
      %v574 = vpop.permute.xlu0 %573
      %576 = vset.pattern.permute.xlu0 2
      %577 = vperm.xlu0 %576, %v323
      %v578 = vpop.permute.xlu0 %577
      %580 = vset.pattern.permute.xlu0 2
      %581 = vperm.xlu0 %580, %v324
      %v582 = vpop.permute.xlu0 %581
      %584 = vset.pattern.permute.xlu0 2
      %585 = vperm.xlu0 %584, %v325
      %v586 = vpop.permute.xlu0 %585
      %588 = vset.pattern.permute.xlu0 2
      %589 = vperm.xlu0 %588, %v326
      %v590 = vpop.permute.xlu0 %589
      %v592 = vlaneseq
      %v593 = vshrl.u32 %v592, 7
      %v594 = vsub.s32 2, %v593
      %v595 = vrot.slane %v327, %v594
      %v596 = vmul.f32 %v530, %v595
      %v597 = vmul.f32 %v534, %v595
      %v598 = vmul.f32 %v538, %v595
      %v599 = vmul.f32 %v542, %v595
      %v600 = vmul.f32 %v546, %v595
      %v601 = vmul.f32 %v550, %v595
      %v602 = vmul.f32 %v554, %v595
      %v603 = vmul.f32 %v558, %v595
      %v604 = vmul.f32 %v562, %v595
      %v605 = vmul.f32 %v566, %v595
      %v606 = vmul.f32 %v570, %v595
      %v607 = vmul.f32 %v574, %v595
      %v608 = vmul.f32 %v578, %v595
      %v609 = vmul.f32 %v582, %v595
      %v610 = vmul.f32 %v586, %v595
      %v611 = vmul.f32 %v590, %v595
      %v612 = vadd.f32 %v512, %v596
      %v613 = vadd.f32 %v513, %v597
      %v614 = vadd.f32 %v514, %v598
      %v615 = vadd.f32 %v515, %v599
      %v616 = vadd.f32 %v516, %v600
      %v617 = vadd.f32 %v517, %v601
      %v618 = vadd.f32 %v518, %v602
      %v619 = vadd.f32 %v519, %v603
      %v620 = vadd.f32 %v520, %v604
      %v621 = vadd.f32 %v521, %v605
      %v622 = vadd.f32 %v522, %v606
      %v623 = vadd.f32 %v523, %v607
      %v624 = vadd.f32 %v524, %v608
      %v625 = vadd.f32 %v525, %v609
      %v626 = vadd.f32 %v526, %v610
      %v627 = vadd.f32 %v527, %v611
      %v628 = vld [vmem:[%s2] sm:$0x1]
      %v630 = vlaneseq
      %v631 = vshrl.u32 %v630, 7
      %v632 = vsub.s32 0, %v631
      %v633 = vrot.slane %v628, %v632
      %v635 = vadd.f32 %v612, %v633
      %v636 = vadd.f32 %v613, %v633
      %v637 = vadd.f32 %v614, %v633
      %v638 = vadd.f32 %v615, %v633
      %v639 = vadd.f32 %v616, %v633
      %v640 = vadd.f32 %v617, %v633
      %v641 = vadd.f32 %v618, %v633
      %v642 = vadd.f32 %v619, %v633
      %v643 = vadd.f32 %v620, %v633
      %v644 = vadd.f32 %v621, %v633
      %v645 = vadd.f32 %v622, %v633
      %v646 = vadd.f32 %v623, %v633
      %v647 = vadd.f32 %v624, %v633
      %v648 = vadd.f32 %v625, %v633
      %v649 = vadd.f32 %v626, %v633
      %v650 = vadd.f32 %v627, %v633
      %v651 = vmax.f32 %v635, 0.0
      %v652 = vmax.f32 %v636, 0.0
      %v653 = vmax.f32 %v637, 0.0
      %v654 = vmax.f32 %v638, 0.0
      %v655 = vmax.f32 %v639, 0.0
      %v656 = vmax.f32 %v640, 0.0
      %v657 = vmax.f32 %v641, 0.0
      %v658 = vmax.f32 %v642, 0.0
      %v659 = vmax.f32 %v643, 0.0
      %v660 = vmax.f32 %v644, 0.0
      %v661 = vmax.f32 %v645, 0.0
      %v662 = vmax.f32 %v646, 0.0
      %v663 = vmax.f32 %v647, 0.0
      %v664 = vmax.f32 %v648, 0.0
      %v665 = vmax.f32 %v649, 0.0
      %v666 = vmax.f32 %v650, 0.0
      %v667 = vpack.c.bf16 %v652, %v651
      %v668 = vpack.c.bf16 %v654, %v653
      %v669 = vpack.c.bf16 %v656, %v655
      %v670 = vpack.c.bf16 %v658, %v657
      %v671 = vpack.c.bf16 %v660, %v659
      %v672 = vpack.c.bf16 %v662, %v661
      %v673 = vpack.c.bf16 %v664, %v663
      %v674 = vpack.c.bf16 %v666, %v665
      %v675 = vld [vmem:[%s3] sm:$0xf]
      %v676 = vld [vmem:[%s3 + $0x4] sm:$0xf]
      %v677 = vld [vmem:[%s3 + $0x8] sm:$0xf]
      %v678 = vld [vmem:[%s3 + $0xc] sm:$0xf]
      %v679 = vld [vmem:[%s3 + $0x10] sm:$0xf]
      %v680 = vld [vmem:[%s3 + $0x14] sm:$0xf]
      %v681 = vld [vmem:[%s3 + $0x18] sm:$0xf]
      %v682 = vld [vmem:[%s3 + $0x1c] sm:$0xf]
      %v683 = vld [vmem:[%s4] sm:$0x1]
      %v685 = vlaneseq
      %v686 = vshrl.u32 %v685, 7
      %v687 = vsub.s32 0, %v686
      %v688 = vrot.slane %v683, %v687
      %v698 = vunpack.c.l.b16 %v675
      %v699 = vunpack.c.l.b16 %v676
      %v700 = vunpack.c.l.b16 %v677
      %v701 = vunpack.c.l.b16 %v678
      %v702 = vunpack.c.l.b16 %v679
      %v703 = vunpack.c.l.b16 %v680
      %v704 = vunpack.c.l.b16 %v681
      %v705 = vunpack.c.l.b16 %v682
      %v706 = vpack.c.b16 %v699, %v698
      %v707 = vpack.c.b16 %v701, %v700
      %v708 = vpack.c.b16 %v703, %v702
      %v709 = vpack.c.b16 %v705, %v704
      %vm714 = vcmask 523264
      %v716 = vsel %vm714, %v667, 0
      %v719 = vsel %vm714, %v668, 0
      %v722 = vsel %vm714, %v669, 0
      %v725 = vsel %vm714, %v670, 0
      %v728 = vsel %vm714, %v671, 0
      %v731 = vsel %vm714, %v672, 0
      %v734 = vsel %vm714, %v673, 0
      %v737 = vsel %vm714, %v674, 0
      %739 = vmatprep.subr.bf16.mxu0 0
      %740 = vmatpush1.bf16.msra.mxu0 %v706
      %741 = vmatprep.subr.bf16.mxu0 0
      %742 = vmatpush1.bf16.msra.mxu0 %v707
      %743 = vmatprep.subr.bf16.mxu0 0
      %744 = vmatpush1.bf16.msra.mxu0 %v708
      %745 = vmatprep.subr.bf16.mxu0 0
      %746 = vmatpush1.bf16.msra.mxu0 %v709
      %747 = vmatprep.subr.bf16.mxu0 0
      %748 = vmatpush1.bf16.msra.mxu0 0
      %749 = vmatprep.subr.bf16.mxu0 0
      %750 = vmatpush1.bf16.msra.mxu0 0
      %751 = vmatprep.subr.bf16.mxu0 0
      %752 = vmatpush1.bf16.msra.mxu0 0
      %753 = vmatprep.subr.bf16.mxu0 0
      %754 = vmatpush1.bf16.msra.mxu0 0
      %755 = vmatprep.subr.bf16.mxu0 0
      %756 = vmatpush1.bf16.msra.mxu0 0
      %757 = vmatprep.subr.bf16.mxu0 0
      %758 = vmatpush1.bf16.msra.mxu0 0
      %759 = vmatprep.subr.bf16.mxu0 0
      %760 = vmatpush1.bf16.msra.mxu0 0
      %761 = vmatprep.subr.bf16.mxu0 0
      %762 = vmatpush1.bf16.msra.mxu0 0
      %763 = vmatprep.subr.bf16.mxu0 0
      %764 = vmatpush1.bf16.msra.mxu0 0
      %765 = vmatprep.subr.bf16.mxu0 0
      %766 = vmatpush1.bf16.msra.mxu0 0
      %767 = vmatprep.subr.bf16.mxu0 0
      %768 = vmatpush1.bf16.msra.mxu0 0
      %769 = vmatprep.subr.bf16.mxu0 0
      %770 = vmatpush1.bf16.msra.mxu0 0
      %771 = vmatprep.mubr.bf16.mxu0 0
      %772 = vmatmul.mubr.bf16.gmra.mrb[0].mxu0 %v716
      %v773 = vpop.f32.mrb[0].mxu0
      %v774 = vadd.f32 %v688, %v773
      %v775 = vpop.f32.mrb[0].mxu0
      %v776 = vpop.f32.mrb[0].mxu0
      %v777 = vadd.f32 %v688, %v776
      %v778 = vpop.f32.mrb[0].mxu0
      %779 = vmatprep.mubr.bf16.mxu0 0
      %780 = vmatmul.mubr.bf16.gmra.mrb[0].mxu0 %v719
      %v781 = vpop.f32.mrb[0].mxu0
      %v782 = vadd.f32 %v688, %v781
      %v783 = vpop.f32.mrb[0].mxu0
      %v784 = vpop.f32.mrb[0].mxu0
      %v785 = vadd.f32 %v688, %v784
      %v786 = vpop.f32.mrb[0].mxu0
      %787 = vmatprep.mubr.bf16.mxu0 0
      %788 = vmatmul.mubr.bf16.gmra.mrb[0].mxu0 %v722
      %v789 = vpop.f32.mrb[0].mxu0
      %v790 = vadd.f32 %v688, %v789
      %v791 = vpop.f32.mrb[0].mxu0
      %v792 = vpop.f32.mrb[0].mxu0
      %v793 = vadd.f32 %v688, %v792
      %v794 = vpop.f32.mrb[0].mxu0
      %795 = vmatprep.mubr.bf16.mxu0 0
      %796 = vmatmul.mubr.bf16.gmra.mrb[0].mxu0 %v725
      %v797 = vpop.f32.mrb[0].mxu0
      %v798 = vadd.f32 %v688, %v797
      %v799 = vpop.f32.mrb[0].mxu0
      %v800 = vpop.f32.mrb[0].mxu0
      %v801 = vadd.f32 %v688, %v800
      %v802 = vpop.f32.mrb[0].mxu0
      %803 = vmatprep.mubr.bf16.mxu0 0
      %804 = vmatmul.mubr.bf16.gmra.mrb[0].mxu0 %v728
      %v805 = vpop.f32.mrb[0].mxu0
      %v806 = vadd.f32 %v688, %v805
      %v807 = vpop.f32.mrb[0].mxu0
      %v808 = vpop.f32.mrb[0].mxu0
      %v809 = vadd.f32 %v688, %v808
      %v810 = vpop.f32.mrb[0].mxu0
      %811 = vmatprep.mubr.bf16.mxu0 0
      %812 = vmatmul.mubr.bf16.gmra.mrb[0].mxu0 %v731
      %v813 = vpop.f32.mrb[0].mxu0
      %v814 = vadd.f32 %v688, %v813
      %v815 = vpop.f32.mrb[0].mxu0
      %v816 = vpop.f32.mrb[0].mxu0
      %v817 = vadd.f32 %v688, %v816
      %v818 = vpop.f32.mrb[0].mxu0
      %819 = vmatprep.mubr.bf16.mxu0 0
      %820 = vmatmul.mubr.bf16.gmra.mrb[0].mxu0 %v734
      %v821 = vpop.f32.mrb[0].mxu0
      %v822 = vadd.f32 %v688, %v821
      %v823 = vpop.f32.mrb[0].mxu0
      %v824 = vpop.f32.mrb[0].mxu0
      %v825 = vadd.f32 %v688, %v824
      %v826 = vpop.f32.mrb[0].mxu0
      %827 = vmatprep.mubr.bf16.mxu0 0
      %828 = vmatmul.mubr.bf16.gmra.mrb[0].mxu0 %v737
      %v829 = vpop.f32.mrb[0].mxu0
      %v830 = vadd.f32 %v688, %v829
      %v831 = vpop.f32.mrb[0].mxu0
      %v832 = vpop.f32.mrb[0].mxu0
      %v833 = vadd.f32 %v688, %v832
      %v834 = vpop.f32.mrb[0].mxu0
      %835 = vdwg.mxu0
      %v836 = vmax.f32 %v774, 0.0
      %v837 = vmax.f32 %v777, 0.0
      %v838 = vmax.f32 %v782, 0.0
      %v839 = vmax.f32 %v785, 0.0
      %v840 = vmax.f32 %v790, 0.0
      %v841 = vmax.f32 %v793, 0.0
      %v842 = vmax.f32 %v798, 0.0
      %v843 = vmax.f32 %v801, 0.0
      %v844 = vmax.f32 %v806, 0.0
      %v845 = vmax.f32 %v809, 0.0
      %v846 = vmax.f32 %v814, 0.0
      %v847 = vmax.f32 %v817, 0.0
      %v848 = vmax.f32 %v822, 0.0
      %v849 = vmax.f32 %v825, 0.0
      %v850 = vmax.f32 %v830, 0.0
      %v851 = vmax.f32 %v833, 0.0
      %v852 = vpack.c.bf16 %v837, %v836
      %v853 = vpack.c.bf16 %v839, %v838
      %v854 = vpack.c.bf16 %v841, %v840
      %v855 = vpack.c.bf16 %v843, %v842
      %v856 = vpack.c.bf16 %v845, %v844
      %v857 = vpack.c.bf16 %v847, %v846
      %v858 = vpack.c.bf16 %v849, %v848
      %v859 = vpack.c.bf16 %v851, %v850
      %v860 = vld [vmem:[%s5] sm:$0xff]
      %v861 = vld [vmem:[%s5 + $0x8] sm:$0xff]
      %v862 = vld [vmem:[%s5 + $0x10] sm:$0xff]
      %v863 = vld [vmem:[%s5 + $0x18] sm:$0xff]
      %v864 = vld [vmem:[%s5 + $0x20] sm:$0xff]
      %v865 = vld [vmem:[%s5 + $0x28] sm:$0xff]
      %v866 = vld [vmem:[%s5 + $0x30] sm:$0xff]
      %v867 = vld [vmem:[%s5 + $0x38] sm:$0xff]
      %v868 = vld [vmem:[%s5 + $0x40] sm:$0xff]
      %v869 = vld [vmem:[%s5 + $0x48] sm:$0xff]
      %v870 = vld [vmem:[%s5 + $0x50] sm:$0xff]
      %v871 = vld [vmem:[%s5 + $0x58] sm:$0xff]
      %v872 = vld [vmem:[%s5 + $0x60] sm:$0xff]
      %v873 = vld [vmem:[%s5 + $0x68] sm:$0xff]
      %v874 = vld [vmem:[%s5 + $0x70] sm:$0xff]
      %v875 = vld [vmem:[%s5 + $0x78] sm:$0xff]
      %v876 = vld [vmem:[%s5 + $0x80] sm:$0xff]
      %v877 = vld [vmem:[%s5 + $0x88] sm:$0xff]
      %v878 = vld [vmem:[%s5 + $0x90] sm:$0xff]
      %v879 = vld [vmem:[%s5 + $0x98] sm:$0xff]
      %v880 = vld [vmem:[%s5 + $0xa0] sm:$0xff]
      %v881 = vld [vmem:[%s5 + $0xa8] sm:$0xff]
      %v882 = vld [vmem:[%s5 + $0xb0] sm:$0xff]
      %v883 = vld [vmem:[%s5 + $0xb8] sm:$0xff]
      %v884 = vld [vmem:[%s5 + $0xc0] sm:$0xff]
      %v885 = vld [vmem:[%s5 + $0xc8] sm:$0xff]
      %v886 = vld [vmem:[%s5 + $0xd0] sm:$0xff]
      %v887 = vld [vmem:[%s5 + $0xd8] sm:$0xff]
      %v888 = vld [vmem:[%s5 + $0xe0] sm:$0xff]
      %v889 = vld [vmem:[%s5 + $0xe8] sm:$0xff]
      %v890 = vld [vmem:[%s5 + $0xf0] sm:$0xff]
      %v891 = vld [vmem:[%s5 + $0xf8] sm:$0xff]
      %v892 = vld [vmem:[%s5 + $0x100] sm:$0xff]
      %v893 = vld [vmem:[%s5 + $0x108] sm:$0xff]
      %v894 = vld [vmem:[%s5 + $0x110] sm:$0xff]
      %v895 = vld [vmem:[%s5 + $0x118] sm:$0xff]
      %v896 = vld [vmem:[%s5 + $0x120] sm:$0xff]
      %v897 = vld [vmem:[%s5 + $0x128] sm:$0xff]
      %v898 = vld [vmem:[%s5 + $0x130] sm:$0xff]
      %v899 = vld [vmem:[%s5 + $0x138] sm:$0xff]
      %v900 = vld [vmem:[%s5 + $0x140] sm:$0xff]
      %v901 = vld [vmem:[%s5 + $0x148] sm:$0xff]
      %v902 = vld [vmem:[%s5 + $0x150] sm:$0xff]
      %v903 = vld [vmem:[%s5 + $0x158] sm:$0xff]
      %v904 = vld [vmem:[%s5 + $0x160] sm:$0xff]
      %v905 = vld [vmem:[%s5 + $0x168] sm:$0xff]
      %v906 = vld [vmem:[%s5 + $0x170] sm:$0xff]
      %v907 = vld [vmem:[%s5 + $0x178] sm:$0xff]
      %v908 = vld [vmem:[%s5 + $0x180] sm:$0xff]
      %v909 = vld [vmem:[%s5 + $0x188] sm:$0xff]
      %v910 = vld [vmem:[%s5 + $0x190] sm:$0xff]
      %v911 = vld [vmem:[%s5 + $0x198] sm:$0xff]
      %v912 = vld [vmem:[%s5 + $0x1a0] sm:$0xff]
      %v913 = vld [vmem:[%s5 + $0x1a8] sm:$0xff]
      %v914 = vld [vmem:[%s5 + $0x1b0] sm:$0xff]
      %v915 = vld [vmem:[%s5 + $0x1b8] sm:$0xff]
      %v916 = vld [vmem:[%s5 + $0x1c0] sm:$0xff]
      %v917 = vld [vmem:[%s5 + $0x1c8] sm:$0xff]
      %v918 = vld [vmem:[%s5 + $0x1d0] sm:$0xff]
      %v919 = vld [vmem:[%s5 + $0x1d8] sm:$0xff]
      %v920 = vld [vmem:[%s5 + $0x1e0] sm:$0xff]
      %v921 = vld [vmem:[%s5 + $0x1e8] sm:$0xff]
      %v922 = vld [vmem:[%s5 + $0x1f0] sm:$0xff]
      %v923 = vld [vmem:[%s5 + $0x1f8] sm:$0xff]
      %v988 = vunpack.c.l.b16 %v860
      %v989 = vunpack.c.h.b16 %v860
      %v990 = vunpack.c.l.b16 %v861
      %v991 = vunpack.c.h.b16 %v861
      %v992 = vunpack.c.l.b16 %v862
      %v993 = vunpack.c.h.b16 %v862
      %v994 = vunpack.c.l.b16 %v863
      %v995 = vunpack.c.h.b16 %v863
      %v996 = vunpack.c.l.b16 %v864
      %v997 = vunpack.c.h.b16 %v864
      %v998 = vunpack.c.l.b16 %v865
      %v999 = vunpack.c.h.b16 %v865
      %v1000 = vunpack.c.l.b16 %v866
      %v1001 = vunpack.c.h.b16 %v866
      %v1002 = vunpack.c.l.b16 %v867
      %v1003 = vunpack.c.h.b16 %v867
      %v1004 = vunpack.c.l.b16 %v868
      %v1005 = vunpack.c.h.b16 %v868
      %v1006 = vunpack.c.l.b16 %v869
      %v1007 = vunpack.c.h.b16 %v869
      %v1008 = vunpack.c.l.b16 %v870
      %v1009 = vunpack.c.h.b16 %v870
      %v1010 = vunpack.c.l.b16 %v871
      %v1011 = vunpack.c.h.b16 %v871
      %v1012 = vunpack.c.l.b16 %v872
      %v1013 = vunpack.c.h.b16 %v872
      %v1014 = vunpack.c.l.b16 %v873
      %v1015 = vunpack.c.h.b16 %v873
      %v1016 = vunpack.c.l.b16 %v874
      %v1017 = vunpack.c.h.b16 %v874
      %v1018 = vunpack.c.l.b16 %v875
      %v1019 = vunpack.c.h.b16 %v875
      %v1020 = vunpack.c.l.b16 %v876
      %v1021 = vunpack.c.h.b16 %v876
      %v1022 = vunpack.c.l.b16 %v877
      %v1023 = vunpack.c.h.b16 %v877
      %v1024 = vunpack.c.l.b16 %v878
      %v1025 = vunpack.c.h.b16 %v878
      %v1026 = vunpack.c.l.b16 %v879
      %v1027 = vunpack.c.h.b16 %v879
      %v1028 = vunpack.c.l.b16 %v880
      %v1029 = vunpack.c.h.b16 %v880
      %v1030 = vunpack.c.l.b16 %v881
      %v1031 = vunpack.c.h.b16 %v881
      %v1032 = vunpack.c.l.b16 %v882
      %v1033 = vunpack.c.h.b16 %v882
      %v1034 = vunpack.c.l.b16 %v883
      %v1035 = vunpack.c.h.b16 %v883
      %v1036 = vunpack.c.l.b16 %v884
      %v1037 = vunpack.c.h.b16 %v884
      %v1038 = vunpack.c.l.b16 %v885
      %v1039 = vunpack.c.h.b16 %v885
      %v1040 = vunpack.c.l.b16 %v886
      %v1041 = vunpack.c.h.b16 %v886
      %v1042 = vunpack.c.l.b16 %v887
      %v1043 = vunpack.c.h.b16 %v887
      %v1044 = vunpack.c.l.b16 %v888
      %v1045 = vunpack.c.h.b16 %v888
      %v1046 = vunpack.c.l.b16 %v889
      %v1047 = vunpack.c.h.b16 %v889
      %v1048 = vunpack.c.l.b16 %v890
      %v1049 = vunpack.c.h.b16 %v890
      %v1050 = vunpack.c.l.b16 %v891
      %v1051 = vunpack.c.h.b16 %v891
      %v1052 = vunpack.c.l.b16 %v892
      %v1053 = vunpack.c.h.b16 %v892
      %v1054 = vunpack.c.l.b16 %v893
      %v1055 = vunpack.c.h.b16 %v893
      %v1056 = vunpack.c.l.b16 %v894
      %v1057 = vunpack.c.h.b16 %v894
      %v1058 = vunpack.c.l.b16 %v895
      %v1059 = vunpack.c.h.b16 %v895
      %v1060 = vunpack.c.l.b16 %v896
      %v1061 = vunpack.c.h.b16 %v896
      %v1062 = vunpack.c.l.b16 %v897
      %v1063 = vunpack.c.h.b16 %v897
      %v1064 = vunpack.c.l.b16 %v898
      %v1065 = vunpack.c.h.b16 %v898
      %v1066 = vunpack.c.l.b16 %v899
      %v1067 = vunpack.c.h.b16 %v899
      %v1068 = vunpack.c.l.b16 %v900
      %v1069 = vunpack.c.h.b16 %v900
      %v1070 = vunpack.c.l.b16 %v901
      %v1071 = vunpack.c.h.b16 %v901
      %v1072 = vunpack.c.l.b16 %v902
      %v1073 = vunpack.c.h.b16 %v902
      %v1074 = vunpack.c.l.b16 %v903
      %v1075 = vunpack.c.h.b16 %v903
      %v1076 = vunpack.c.l.b16 %v904
      %v1077 = vunpack.c.h.b16 %v904
      %v1078 = vunpack.c.l.b16 %v905
      %v1079 = vunpack.c.h.b16 %v905
      %v1080 = vunpack.c.l.b16 %v906
      %v1081 = vunpack.c.h.b16 %v906
      %v1082 = vunpack.c.l.b16 %v907
      %v1083 = vunpack.c.h.b16 %v907
      %v1084 = vunpack.c.l.b16 %v908
      %v1085 = vunpack.c.h.b16 %v908
      %v1086 = vunpack.c.l.b16 %v909
      %v1087 = vunpack.c.h.b16 %v909
      %v1088 = vunpack.c.l.b16 %v910
      %v1089 = vunpack.c.h.b16 %v910
      %v1090 = vunpack.c.l.b16 %v911
      %v1091 = vunpack.c.h.b16 %v911
      %v1092 = vunpack.c.l.b16 %v912
      %v1093 = vunpack.c.h.b16 %v912
      %v1094 = vunpack.c.l.b16 %v913
      %v1095 = vunpack.c.h.b16 %v913
      %v1096 = vunpack.c.l.b16 %v914
      %v1097 = vunpack.c.h.b16 %v914
      %v1098 = vunpack.c.l.b16 %v915
      %v1099 = vunpack.c.h.b16 %v915
      %v1100 = vunpack.c.l.b16 %v916
      %v1101 = vunpack.c.h.b16 %v916
      %v1102 = vunpack.c.l.b16 %v917
      %v1103 = vunpack.c.h.b16 %v917
      %v1104 = vunpack.c.l.b16 %v918
      %v1105 = vunpack.c.h.b16 %v918
      %v1106 = vunpack.c.l.b16 %v919
      %v1107 = vunpack.c.h.b16 %v919
      %v1108 = vunpack.c.l.b16 %v920
      %v1109 = vunpack.c.h.b16 %v920
      %v1110 = vunpack.c.l.b16 %v921
      %v1111 = vunpack.c.h.b16 %v921
      %v1112 = vunpack.c.l.b16 %v922
      %v1113 = vunpack.c.h.b16 %v922
      %v1114 = vunpack.c.l.b16 %v923
      %v1115 = vunpack.c.h.b16 %v923
      %v1116 = vpack.c.b16 %v996, %v988
      %v1117 = vpack.c.b16 %v997, %v989
      %v1118 = vpack.c.b16 %v998, %v990
      %v1119 = vpack.c.b16 %v999, %v991
      %v1120 = vpack.c.b16 %v1000, %v992
      %v1121 = vpack.c.b16 %v1001, %v993
      %v1122 = vpack.c.b16 %v1002, %v994
      %v1123 = vpack.c.b16 %v1003, %v995
      %v1124 = vpack.c.b16 %v1012, %v1004
      %v1125 = vpack.c.b16 %v1013, %v1005
      %v1126 = vpack.c.b16 %v1014, %v1006
      %v1127 = vpack.c.b16 %v1015, %v1007
      %v1128 = vpack.c.b16 %v1016, %v1008
      %v1129 = vpack.c.b16 %v1017, %v1009
      %v1130 = vpack.c.b16 %v1018, %v1010
      %v1131 = vpack.c.b16 %v1019, %v1011
      %v1132 = vpack.c.b16 %v1028, %v1020
      %v1133 = vpack.c.b16 %v1029, %v1021
      %v1134 = vpack.c.b16 %v1030, %v1022
      %v1135 = vpack.c.b16 %v1031, %v1023
      %v1136 = vpack.c.b16 %v1032, %v1024
      %v1137 = vpack.c.b16 %v1033, %v1025
      %v1138 = vpack.c.b16 %v1034, %v1026
      %v1139 = vpack.c.b16 %v1035, %v1027
      %v1140 = vpack.c.b16 %v1044, %v1036
      %v1141 = vpack.c.b16 %v1045, %v1037
      %v1142 = vpack.c.b16 %v1046, %v1038
      %v1143 = vpack.c.b16 %v1047, %v1039
      %v1144 = vpack.c.b16 %v1048, %v1040
      %v1145 = vpack.c.b16 %v1049, %v1041
      %v1146 = vpack.c.b16 %v1050, %v1042
      %v1147 = vpack.c.b16 %v1051, %v1043
      %v1148 = vpack.c.b16 %v1060, %v1052
      %v1149 = vpack.c.b16 %v1061, %v1053
      %v1150 = vpack.c.b16 %v1062, %v1054
      %v1151 = vpack.c.b16 %v1063, %v1055
      %v1152 = vpack.c.b16 %v1064, %v1056
      %v1153 = vpack.c.b16 %v1065, %v1057
      %v1154 = vpack.c.b16 %v1066, %v1058
      %v1155 = vpack.c.b16 %v1067, %v1059
      %v1156 = vpack.c.b16 %v1076, %v1068
      %v1157 = vpack.c.b16 %v1077, %v1069
      %v1158 = vpack.c.b16 %v1078, %v1070
      %v1159 = vpack.c.b16 %v1079, %v1071
      %v1160 = vpack.c.b16 %v1080, %v1072
      %v1161 = vpack.c.b16 %v1081, %v1073
      %v1162 = vpack.c.b16 %v1082, %v1074
      %v1163 = vpack.c.b16 %v1083, %v1075
      %v1164 = vpack.c.b16 %v1092, %v1084
      %v1165 = vpack.c.b16 %v1093, %v1085
      %v1166 = vpack.c.b16 %v1094, %v1086
      %v1167 = vpack.c.b16 %v1095, %v1087
      %v1168 = vpack.c.b16 %v1096, %v1088
      %v1169 = vpack.c.b16 %v1097, %v1089
      %v1170 = vpack.c.b16 %v1098, %v1090
      %v1171 = vpack.c.b16 %v1099, %v1091
      %v1172 = vpack.c.b16 %v1108, %v1100
      %v1173 = vpack.c.b16 %v1109, %v1101
      %v1174 = vpack.c.b16 %v1110, %v1102
      %v1175 = vpack.c.b16 %v1111, %v1103
      %v1176 = vpack.c.b16 %v1112, %v1104
      %v1177 = vpack.c.b16 %v1113, %v1105
      %v1178 = vpack.c.b16 %v1114, %v1106
      %v1179 = vpack.c.b16 %v1115, %v1107
      %1244 = vmatprep.subr.bf16.mxu0 %v1117
      %1245 = vmatpush1.bf16.msra.mxu0 %v1116
      %1246 = vmatprep.subr.bf16.mxu0 %v1125
      %1247 = vmatpush1.bf16.msra.mxu0 %v1124
      %1248 = vmatprep.subr.bf16.mxu0 %v1133
      %1249 = vmatpush1.bf16.msra.mxu0 %v1132
      %1250 = vmatprep.subr.bf16.mxu0 %v1141
      %1251 = vmatpush1.bf16.msra.mxu0 %v1140
      %1252 = vmatprep.subr.bf16.mxu0 %v1149
      %1253 = vmatpush1.bf16.msra.mxu0 %v1148
      %1254 = vmatprep.subr.bf16.mxu0 %v1157
      %1255 = vmatpush1.bf16.msra.mxu0 %v1156
      %1256 = vmatprep.subr.bf16.mxu0 %v1165
      %1257 = vmatpush1.bf16.msra.mxu0 %v1164
      %1258 = vmatprep.subr.bf16.mxu0 %v1173
      %1259 = vmatpush1.bf16.msra.mxu0 %v1172
      %1260 = vmatprep.subr.bf16.mxu0 0
      %1261 = vmatpush1.bf16.msra.mxu0 0
      %1262 = vmatprep.subr.bf16.mxu0 0
      %1263 = vmatpush1.bf16.msra.mxu0 0
      %1264 = vmatprep.subr.bf16.mxu0 0
      %1265 = vmatpush1.bf16.msra.mxu0 0
      %1266 = vmatprep.subr.bf16.mxu0 0
      %1267 = vmatpush1.bf16.msra.mxu0 0
      %1268 = vmatprep.subr.bf16.mxu0 0
      %1269 = vmatpush1.bf16.msra.mxu0 0
      %1270 = vmatprep.subr.bf16.mxu0 0
      %1271 = vmatpush1.bf16.msra.mxu0 0
      %1272 = vmatprep.subr.bf16.mxu0 0
      %1273 = vmatpush1.bf16.msra.mxu0 0
      %1274 = vmatprep.subr.bf16.mxu0 0
      %1275 = vmatpush1.bf16.msra.mxu0 0
      %1276 = vmatprep.mubr.bf16.mxu0 0
      %1277 = vmatmul.mubr.bf16.gmra.mrb[0].mxu0 %v852
      %v1278 = vpop.f32.mrb[0].mxu0
      %v1279 = vadd.f32 0.0, %v1278
      %v1280 = vpop.f32.mrb[0].mxu0
      %v1281 = vadd.f32 0.0, %v1280
      %v1282 = vpop.f32.mrb[0].mxu0
      %v1283 = vadd.f32 0.0, %v1282
      %v1284 = vpop.f32.mrb[0].mxu0
      %v1285 = vadd.f32 0.0, %v1284
      %1286 = vmatprep.mubr.bf16.mxu0 0
      %1287 = vmatmul.mubr.bf16.gmra.mrb[0].mxu0 %v853
      %v1288 = vpop.f32.mrb[0].mxu0
      %v1289 = vadd.f32 0.0, %v1288
      %v1290 = vpop.f32.mrb[0].mxu0
      %v1291 = vadd.f32 0.0, %v1290
      %v1292 = vpop.f32.mrb[0].mxu0
      %v1293 = vadd.f32 0.0, %v1292
      %v1294 = vpop.f32.mrb[0].mxu0
      %v1295 = vadd.f32 0.0, %v1294
      %1296 = vmatprep.mubr.bf16.mxu0 0
      %1297 = vmatmul.mubr.bf16.gmra.mrb[0].mxu0 %v854
      %v1298 = vpop.f32.mrb[0].mxu0
      %v1299 = vadd.f32 0.0, %v1298
      %v1300 = vpop.f32.mrb[0].mxu0
      %v1301 = vadd.f32 0.0, %v1300
      %v1302 = vpop.f32.mrb[0].mxu0
      %v1303 = vadd.f32 0.0, %v1302
      %v1304 = vpop.f32.mrb[0].mxu0
      %v1305 = vadd.f32 0.0, %v1304
      %1306 = vmatprep.mubr.bf16.mxu0 0
      %1307 = vmatmul.mubr.bf16.gmra.mrb[0].mxu0 %v855
      %v1308 = vpop.f32.mrb[0].mxu0
      %v1309 = vadd.f32 0.0, %v1308
      %v1310 = vpop.f32.mrb[0].mxu0
      %v1311 = vadd.f32 0.0, %v1310
      %v1312 = vpop.f32.mrb[0].mxu0
      %v1313 = vadd.f32 0.0, %v1312
      %v1314 = vpop.f32.mrb[0].mxu0
      %v1315 = vadd.f32 0.0, %v1314
      %1316 = vmatprep.mubr.bf16.mxu0 0
      %1317 = vmatmul.mubr.bf16.gmra.mrb[0].mxu0 %v856
      %v1318 = vpop.f32.mrb[0].mxu0
      %v1319 = vadd.f32 0.0, %v1318
      %v1320 = vpop.f32.mrb[0].mxu0
      %v1321 = vadd.f32 0.0, %v1320
      %v1322 = vpop.f32.mrb[0].mxu0
      %v1323 = vadd.f32 0.0, %v1322
      %v1324 = vpop.f32.mrb[0].mxu0
      %v1325 = vadd.f32 0.0, %v1324
      %1326 = vmatprep.mubr.bf16.mxu0 0
      %1327 = vmatmul.mubr.bf16.gmra.mrb[0].mxu0 %v857
      %v1328 = vpop.f32.mrb[0].mxu0
      %v1329 = vadd.f32 0.0, %v1328
      %v1330 = vpop.f32.mrb[0].mxu0
      %v1331 = vadd.f32 0.0, %v1330
      %v1332 = vpop.f32.mrb[0].mxu0
      %v1333 = vadd.f32 0.0, %v1332
      %v1334 = vpop.f32.mrb[0].mxu0
      %v1335 = vadd.f32 0.0, %v1334
      %1336 = vmatprep.mubr.bf16.mxu0 0
      %1337 = vmatmul.mubr.bf16.gmra.mrb[0].mxu0 %v858
      %v1338 = vpop.f32.mrb[0].mxu0
      %v1339 = vadd.f32 0.0, %v1338
      %v1340 = vpop.f32.mrb[0].mxu0
      %v1341 = vadd.f32 0.0, %v1340
      %v1342 = vpop.f32.mrb[0].mxu0
      %v1343 = vadd.f32 0.0, %v1342
      %v1344 = vpop.f32.mrb[0].mxu0
      %v1345 = vadd.f32 0.0, %v1344
      %1346 = vmatprep.mubr.bf16.mxu0 0
      %1347 = vmatmul.mubr.bf16.gmra.mrb[0].mxu0 %v859
      %v1348 = vpop.f32.mrb[0].mxu0
      %v1349 = vadd.f32 0.0, %v1348
      %v1350 = vpop.f32.mrb[0].mxu0
      %v1351 = vadd.f32 0.0, %v1350
      %v1352 = vpop.f32.mrb[0].mxu0
      %v1353 = vadd.f32 0.0, %v1352
      %v1354 = vpop.f32.mrb[0].mxu0
      %v1355 = vadd.f32 0.0, %v1354
      %1356 = vdwg.mxu0
      %1357 = vmatprep.subr.bf16.mxu0 %v1119
      %1358 = vmatpush1.bf16.msra.mxu0 %v1118
      %1359 = vmatprep.subr.bf16.mxu0 %v1127
      %1360 = vmatpush1.bf16.msra.mxu0 %v1126
      %1361 = vmatprep.subr.bf16.mxu0 %v1135
      %1362 = vmatpush1.bf16.msra.mxu0 %v1134
      %1363 = vmatprep.subr.bf16.mxu0 %v1143
      %1364 = vmatpush1.bf16.msra.mxu0 %v1142
      %1365 = vmatprep.subr.bf16.mxu0 %v1151
      %1366 = vmatpush1.bf16.msra.mxu0 %v1150
      %1367 = vmatprep.subr.bf16.mxu0 %v1159
      %1368 = vmatpush1.bf16.msra.mxu0 %v1158
      %1369 = vmatprep.subr.bf16.mxu0 %v1167
      %1370 = vmatpush1.bf16.msra.mxu0 %v1166
      %1371 = vmatprep.subr.bf16.mxu0 %v1175
      %1372 = vmatpush1.bf16.msra.mxu0 %v1174
      %1373 = vmatprep.subr.bf16.mxu0 0
      %1374 = vmatpush1.bf16.msra.mxu0 0
      %1375 = vmatprep.subr.bf16.mxu0 0
      %1376 = vmatpush1.bf16.msra.mxu0 0
      %1377 = vmatprep.subr.bf16.mxu0 0
      %1378 = vmatpush1.bf16.msra.mxu0 0
      %1379 = vmatprep.subr.bf16.mxu0 0
      %1380 = vmatpush1.bf16.msra.mxu0 0
      %1381 = vmatprep.subr.bf16.mxu0 0
      %1382 = vmatpush1.bf16.msra.mxu0 0
      %1383 = vmatprep.subr.bf16.mxu0 0
      %1384 = vmatpush1.bf16.msra.mxu0 0
      %1385 = vmatprep.subr.bf16.mxu0 0
      %1386 = vmatpush1.bf16.msra.mxu0 0
      %1387 = vmatprep.subr.bf16.mxu0 0
      %1388 = vmatpush1.bf16.msra.mxu0 0
      %1389 = vmatprep.mubr.bf16.mxu0 0
      %1390 = vmatmul.mubr.bf16.gmra.mrb[0].mxu0 %v852
      %v1391 = vpop.f32.mrb[0].mxu0
      %v1392 = vadd.f32 0.0, %v1391
      %v1393 = vpop.f32.mrb[0].mxu0
      %v1394 = vadd.f32 0.0, %v1393
      %v1395 = vpop.f32.mrb[0].mxu0
      %v1396 = vadd.f32 0.0, %v1395
      %v1397 = vpop.f32.mrb[0].mxu0
      %v1398 = vadd.f32 0.0, %v1397
      %1399 = vmatprep.mubr.bf16.mxu0 0
      %1400 = vmatmul.mubr.bf16.gmra.mrb[0].mxu0 %v853
      %v1401 = vpop.f32.mrb[0].mxu0
      %v1402 = vadd.f32 0.0, %v1401
      %v1403 = vpop.f32.mrb[0].mxu0
      %v1404 = vadd.f32 0.0, %v1403
      %v1405 = vpop.f32.mrb[0].mxu0
      %v1406 = vadd.f32 0.0, %v1405
      %v1407 = vpop.f32.mrb[0].mxu0
      %v1408 = vadd.f32 0.0, %v1407
      %1409 = vmatprep.mubr.bf16.mxu0 0
      %1410 = vmatmul.mubr.bf16.gmra.mrb[0].mxu0 %v854
      %v1411 = vpop.f32.mrb[0].mxu0
      %v1412 = vadd.f32 0.0, %v1411
      %v1413 = vpop.f32.mrb[0].mxu0
      %v1414 = vadd.f32 0.0, %v1413
      %v1415 = vpop.f32.mrb[0].mxu0
      %v1416 = vadd.f32 0.0, %v1415
      %v1417 = vpop.f32.mrb[0].mxu0
      %v1418 = vadd.f32 0.0, %v1417
      %1419 = vmatprep.mubr.bf16.mxu0 0
      %1420 = vmatmul.mubr.bf16.gmra.mrb[0].mxu0 %v855
      %v1421 = vpop.f32.mrb[0].mxu0
      %v1422 = vadd.f32 0.0, %v1421
      %v1423 = vpop.f32.mrb[0].mxu0
      %v1424 = vadd.f32 0.0, %v1423
      %v1425 = vpop.f32.mrb[0].mxu0
      %v1426 = vadd.f32 0.0, %v1425
      %v1427 = vpop.f32.mrb[0].mxu0
      %v1428 = vadd.f32 0.0, %v1427
      %1429 = vmatprep.mubr.bf16.mxu0 0
      %1430 = vmatmul.mubr.bf16.gmra.mrb[0].mxu0 %v856
      %v1431 = vpop.f32.mrb[0].mxu0
      %v1432 = vadd.f32 0.0, %v1431
      %v1433 = vpop.f32.mrb[0].mxu0
      %v1434 = vadd.f32 0.0, %v1433
      %v1435 = vpop.f32.mrb[0].mxu0
      %v1436 = vadd.f32 0.0, %v1435
      %v1437 = vpop.f32.mrb[0].mxu0
      %v1438 = vadd.f32 0.0, %v1437
      %1439 = vmatprep.mubr.bf16.mxu0 0
      %1440 = vmatmul.mubr.bf16.gmra.mrb[0].mxu0 %v857
      %v1441 = vpop.f32.mrb[0].mxu0
      %v1442 = vadd.f32 0.0, %v1441
      %v1443 = vpop.f32.mrb[0].mxu0
      %v1444 = vadd.f32 0.0, %v1443
      %v1445 = vpop.f32.mrb[0].mxu0
      %v1446 = vadd.f32 0.0, %v1445
      %v1447 = vpop.f32.mrb[0].mxu0
      %v1448 = vadd.f32 0.0, %v1447
      %1449 = vmatprep.mubr.bf16.mxu0 0
      %1450 = vmatmul.mubr.bf16.gmra.mrb[0].mxu0 %v858
      %v1451 = vpop.f32.mrb[0].mxu0
      %v1452 = vadd.f32 0.0, %v1451
      %v1453 = vpop.f32.mrb[0].mxu0
      %v1454 = vadd.f32 0.0, %v1453
      %v1455 = vpop.f32.mrb[0].mxu0
      %v1456 = vadd.f32 0.0, %v1455
      %v1457 = vpop.f32.mrb[0].mxu0
      %v1458 = vadd.f32 0.0, %v1457
      %1459 = vmatprep.mubr.bf16.mxu0 0
      %1460 = vmatmul.mubr.bf16.gmra.mrb[0].mxu0 %v859
      %v1461 = vpop.f32.mrb[0].mxu0
      %v1462 = vadd.f32 0.0, %v1461
      %v1463 = vpop.f32.mrb[0].mxu0
      %v1464 = vadd.f32 0.0, %v1463
      %v1465 = vpop.f32.mrb[0].mxu0
      %v1466 = vadd.f32 0.0, %v1465
      %v1467 = vpop.f32.mrb[0].mxu0
      %v1468 = vadd.f32 0.0, %v1467
      %1469 = vdwg.mxu0
      %1470 = vmatprep.subr.bf16.mxu0 %v1121
      %1471 = vmatpush1.bf16.msra.mxu0 %v1120
      %1472 = vmatprep.subr.bf16.mxu0 %v1129
      %1473 = vmatpush1.bf16.msra.mxu0 %v1128
      %1474 = vmatprep.subr.bf16.mxu0 %v1137
      %1475 = vmatpush1.bf16.msra.mxu0 %v1136
      %1476 = vmatprep.subr.bf16.mxu0 %v1145
      %1477 = vmatpush1.bf16.msra.mxu0 %v1144
      %1478 = vmatprep.subr.bf16.mxu0 %v1153
      %1479 = vmatpush1.bf16.msra.mxu0 %v1152
      %1480 = vmatprep.subr.bf16.mxu0 %v1161
      %1481 = vmatpush1.bf16.msra.mxu0 %v1160
      %1482 = vmatprep.subr.bf16.mxu0 %v1169
      %1483 = vmatpush1.bf16.msra.mxu0 %v1168
      %1484 = vmatprep.subr.bf16.mxu0 %v1177
      %1485 = vmatpush1.bf16.msra.mxu0 %v1176
      %1486 = vmatprep.subr.bf16.mxu0 0
      %1487 = vmatpush1.bf16.msra.mxu0 0
      %1488 = vmatprep.subr.bf16.mxu0 0
      %1489 = vmatpush1.bf16.msra.mxu0 0
      %1490 = vmatprep.subr.bf16.mxu0 0
      %1491 = vmatpush1.bf16.msra.mxu0 0
      %1492 = vmatprep.subr.bf16.mxu0 0
      %1493 = vmatpush1.bf16.msra.mxu0 0
      %1494 = vmatprep.subr.bf16.mxu0 0
      %1495 = vmatpush1.bf16.msra.mxu0 0
      %1496 = vmatprep.subr.bf16.mxu0 0
      %1497 = vmatpush1.bf16.msra.mxu0 0
      %1498 = vmatprep.subr.bf16.mxu0 0
      %1499 = vmatpush1.bf16.msra.mxu0 0
      %1500 = vmatprep.subr.bf16.mxu0 0
      %1501 = vmatpush1.bf16.msra.mxu0 0
      %1502 = vmatprep.mubr.bf16.mxu0 0
      %1503 = vmatmul.mubr.bf16.gmra.mrb[0].mxu0 %v852
      %v1504 = vpop.f32.mrb[0].mxu0
      %v1505 = vadd.f32 0.0, %v1504
      %v1506 = vpop.f32.mrb[0].mxu0
      %v1507 = vadd.f32 0.0, %v1506
      %v1508 = vpop.f32.mrb[0].mxu0
      %v1509 = vadd.f32 0.0, %v1508
      %v1510 = vpop.f32.mrb[0].mxu0
      %v1511 = vadd.f32 0.0, %v1510
      %1512 = vmatprep.mubr.bf16.mxu0 0
      %1513 = vmatmul.mubr.bf16.gmra.mrb[0].mxu0 %v853
      %v1514 = vpop.f32.mrb[0].mxu0
      %v1515 = vadd.f32 0.0, %v1514
      %v1516 = vpop.f32.mrb[0].mxu0
      %v1517 = vadd.f32 0.0, %v1516
      %v1518 = vpop.f32.mrb[0].mxu0
      %v1519 = vadd.f32 0.0, %v1518
      %v1520 = vpop.f32.mrb[0].mxu0
      %v1521 = vadd.f32 0.0, %v1520
      %1522 = vmatprep.mubr.bf16.mxu0 0
      %1523 = vmatmul.mubr.bf16.gmra.mrb[0].mxu0 %v854
      %v1524 = vpop.f32.mrb[0].mxu0
      %v1525 = vadd.f32 0.0, %v1524
      %v1526 = vpop.f32.mrb[0].mxu0
      %v1527 = vadd.f32 0.0, %v1526
      %v1528 = vpop.f32.mrb[0].mxu0
      %v1529 = vadd.f32 0.0, %v1528
      %v1530 = vpop.f32.mrb[0].mxu0
      %v1531 = vadd.f32 0.0, %v1530
      %1532 = vmatprep.mubr.bf16.mxu0 0
      %1533 = vmatmul.mubr.bf16.gmra.mrb[0].mxu0 %v855
      %v1534 = vpop.f32.mrb[0].mxu0
      %v1535 = vadd.f32 0.0, %v1534
      %v1536 = vpop.f32.mrb[0].mxu0
      %v1537 = vadd.f32 0.0, %v1536
      %v1538 = vpop.f32.mrb[0].mxu0
      %v1539 = vadd.f32 0.0, %v1538
      %v1540 = vpop.f32.mrb[0].mxu0
      %v1541 = vadd.f32 0.0, %v1540
      %1542 = vmatprep.mubr.bf16.mxu0 0
      %1543 = vmatmul.mubr.bf16.gmra.mrb[0].mxu0 %v856
      %v1544 = vpop.f32.mrb[0].mxu0
      %v1545 = vadd.f32 0.0, %v1544
      %v1546 = vpop.f32.mrb[0].mxu0
      %v1547 = vadd.f32 0.0, %v1546
      %v1548 = vpop.f32.mrb[0].mxu0
      %v1549 = vadd.f32 0.0, %v1548
      %v1550 = vpop.f32.mrb[0].mxu0
      %v1551 = vadd.f32 0.0, %v1550
      %1552 = vmatprep.mubr.bf16.mxu0 0
      %1553 = vmatmul.mubr.bf16.gmra.mrb[0].mxu0 %v857
      %v1554 = vpop.f32.mrb[0].mxu0
      %v1555 = vadd.f32 0.0, %v1554
      %v1556 = vpop.f32.mrb[0].mxu0
      %v1557 = vadd.f32 0.0, %v1556
      %v1558 = vpop.f32.mrb[0].mxu0
      %v1559 = vadd.f32 0.0, %v1558
      %v1560 = vpop.f32.mrb[0].mxu0
      %v1561 = vadd.f32 0.0, %v1560
      %1562 = vmatprep.mubr.bf16.mxu0 0
      %1563 = vmatmul.mubr.bf16.gmra.mrb[0].mxu0 %v858
      %v1564 = vpop.f32.mrb[0].mxu0
      %v1565 = vadd.f32 0.0, %v1564
      %v1566 = vpop.f32.mrb[0].mxu0
      %v1567 = vadd.f32 0.0, %v1566
      %v1568 = vpop.f32.mrb[0].mxu0
      %v1569 = vadd.f32 0.0, %v1568
      %v1570 = vpop.f32.mrb[0].mxu0
      %v1571 = vadd.f32 0.0, %v1570
      %1572 = vmatprep.mubr.bf16.mxu0 0
      %1573 = vmatmul.mubr.bf16.gmra.mrb[0].mxu0 %v859
      %v1574 = vpop.f32.mrb[0].mxu0
      %v1575 = vadd.f32 0.0, %v1574
      %v1576 = vpop.f32.mrb[0].mxu0
      %v1577 = vadd.f32 0.0, %v1576
      %v1578 = vpop.f32.mrb[0].mxu0
      %v1579 = vadd.f32 0.0, %v1578
      %v1580 = vpop.f32.mrb[0].mxu0
      %v1581 = vadd.f32 0.0, %v1580
      %1582 = vdwg.mxu0
      %1583 = vmatprep.subr.bf16.mxu0 %v1123
      %1584 = vmatpush1.bf16.msra.mxu0 %v1122
      %1585 = vmatprep.subr.bf16.mxu0 %v1131
      %1586 = vmatpush1.bf16.msra.mxu0 %v1130
      %1587 = vmatprep.subr.bf16.mxu0 %v1139
      %1588 = vmatpush1.bf16.msra.mxu0 %v1138
      %1589 = vmatprep.subr.bf16.mxu0 %v1147
      %1590 = vmatpush1.bf16.msra.mxu0 %v1146
      %1591 = vmatprep.subr.bf16.mxu0 %v1155
      %1592 = vmatpush1.bf16.msra.mxu0 %v1154
      %1593 = vmatprep.subr.bf16.mxu0 %v1163
      %1594 = vmatpush1.bf16.msra.mxu0 %v1162
      %1595 = vmatprep.subr.bf16.mxu0 %v1171
      %1596 = vmatpush1.bf16.msra.mxu0 %v1170
      %1597 = vmatprep.subr.bf16.mxu0 %v1179
      %1598 = vmatpush1.bf16.msra.mxu0 %v1178
      %1599 = vmatprep.subr.bf16.mxu0 0
      %1600 = vmatpush1.bf16.msra.mxu0 0
      %1601 = vmatprep.subr.bf16.mxu0 0
      %1602 = vmatpush1.bf16.msra.mxu0 0
      %1603 = vmatprep.subr.bf16.mxu0 0
      %1604 = vmatpush1.bf16.msra.mxu0 0
      %1605 = vmatprep.subr.bf16.mxu0 0
      %1606 = vmatpush1.bf16.msra.mxu0 0
      %1607 = vmatprep.subr.bf16.mxu0 0
      %1608 = vmatpush1.bf16.msra.mxu0 0
      %1609 = vmatprep.subr.bf16.mxu0 0
      %1610 = vmatpush1.bf16.msra.mxu0 0
      %1611 = vmatprep.subr.bf16.mxu0 0
      %1612 = vmatpush1.bf16.msra.mxu0 0
      %1613 = vmatprep.subr.bf16.mxu0 0
      %1614 = vmatpush1.bf16.msra.mxu0 0
      %1615 = vmatprep.mubr.bf16.mxu0 0
      %1616 = vmatmul.mubr.bf16.gmra.mrb[0].mxu0 %v852
      %v1617 = vpop.f32.mrb[0].mxu0
      %v1618 = vadd.f32 0.0, %v1617
      %v1619 = vpop.f32.mrb[0].mxu0
      %v1620 = vadd.f32 0.0, %v1619
      %v1621 = vpop.f32.mrb[0].mxu0
      %v1622 = vadd.f32 0.0, %v1621
      %v1623 = vpop.f32.mrb[0].mxu0
      %v1624 = vadd.f32 0.0, %v1623
      %1625 = vmatprep.mubr.bf16.mxu0 0
      %1626 = vmatmul.mubr.bf16.gmra.mrb[0].mxu0 %v853
      %v1627 = vpop.f32.mrb[0].mxu0
      %v1628 = vadd.f32 0.0, %v1627
      %v1629 = vpop.f32.mrb[0].mxu0
      %v1630 = vadd.f32 0.0, %v1629
      %v1631 = vpop.f32.mrb[0].mxu0
      %v1632 = vadd.f32 0.0, %v1631
      %v1633 = vpop.f32.mrb[0].mxu0
      %v1634 = vadd.f32 0.0, %v1633
      %1635 = vmatprep.mubr.bf16.mxu0 0
      %1636 = vmatmul.mubr.bf16.gmra.mrb[0].mxu0 %v854
      %v1637 = vpop.f32.mrb[0].mxu0
      %v1638 = vadd.f32 0.0, %v1637
      %v1639 = vpop.f32.mrb[0].mxu0
      %v1640 = vadd.f32 0.0, %v1639
      %v1641 = vpop.f32.mrb[0].mxu0
      %v1642 = vadd.f32 0.0, %v1641
      %v1643 = vpop.f32.mrb[0].mxu0
      %v1644 = vadd.f32 0.0, %v1643
      %1645 = vmatprep.mubr.bf16.mxu0 0
      %1646 = vmatmul.mubr.bf16.gmra.mrb[0].mxu0 %v855
      %v1647 = vpop.f32.mrb[0].mxu0
      %v1648 = vadd.f32 0.0, %v1647
      %v1649 = vpop.f32.mrb[0].mxu0
      %v1650 = vadd.f32 0.0, %v1649
      %v1651 = vpop.f32.mrb[0].mxu0
      %v1652 = vadd.f32 0.0, %v1651
      %v1653 = vpop.f32.mrb[0].mxu0
      %v1654 = vadd.f32 0.0, %v1653
      %1655 = vmatprep.mubr.bf16.mxu0 0
      %1656 = vmatmul.mubr.bf16.gmra.mrb[0].mxu0 %v856
      %v1657 = vpop.f32.mrb[0].mxu0
      %v1658 = vadd.f32 0.0, %v1657
      %v1659 = vpop.f32.mrb[0].mxu0
      %v1660 = vadd.f32 0.0, %v1659
      %v1661 = vpop.f32.mrb[0].mxu0
      %v1662 = vadd.f32 0.0, %v1661
      %v1663 = vpop.f32.mrb[0].mxu0
      %v1664 = vadd.f32 0.0, %v1663
      %1665 = vmatprep.mubr.bf16.mxu0 0
      %1666 = vmatmul.mubr.bf16.gmra.mrb[0].mxu0 %v857
      %v1667 = vpop.f32.mrb[0].mxu0
      %v1668 = vadd.f32 0.0, %v1667
      %v1669 = vpop.f32.mrb[0].mxu0
      %v1670 = vadd.f32 0.0, %v1669
      %v1671 = vpop.f32.mrb[0].mxu0
      %v1672 = vadd.f32 0.0, %v1671
      %v1673 = vpop.f32.mrb[0].mxu0
      %v1674 = vadd.f32 0.0, %v1673
      %1675 = vmatprep.mubr.bf16.mxu0 0
      %1676 = vmatmul.mubr.bf16.gmra.mrb[0].mxu0 %v858
      %v1677 = vpop.f32.mrb[0].mxu0
      %v1678 = vadd.f32 0.0, %v1677
      %v1679 = vpop.f32.mrb[0].mxu0
      %v1680 = vadd.f32 0.0, %v1679
      %v1681 = vpop.f32.mrb[0].mxu0
      %v1682 = vadd.f32 0.0, %v1681
      %v1683 = vpop.f32.mrb[0].mxu0
      %v1684 = vadd.f32 0.0, %v1683
      %1685 = vmatprep.mubr.bf16.mxu0 0
      %1686 = vmatmul.mubr.bf16.gmra.mrb[0].mxu0 %v859
      %v1687 = vpop.f32.mrb[0].mxu0
      %v1688 = vadd.f32 0.0, %v1687
      %v1689 = vpop.f32.mrb[0].mxu0
      %v1690 = vadd.f32 0.0, %v1689
      %v1691 = vpop.f32.mrb[0].mxu0
      %v1692 = vadd.f32 0.0, %v1691
      %v1693 = vpop.f32.mrb[0].mxu0
      %v1694 = vadd.f32 0.0, %v1693
      %1695 = vdwg.mxu0
      %v1696 = vld [vmem:[%s304] sm:$0xff]
      %v1697 = vmax.f32 %v1279, %v1283
      %v1698 = vmax.f32 %v1697, %v1289
      %v1699 = vmax.f32 %v1698, %v1293
      %v1700 = vmax.f32 %v1699, %v1299
      %v1701 = vmax.f32 %v1700, %v1303
      %v1702 = vmax.f32 %v1701, %v1309
      %v1703 = vmax.f32 %v1702, %v1313
      %v1704 = vmax.f32 %v1703, %v1319
      %v1705 = vmax.f32 %v1704, %v1323
      %v1706 = vmax.f32 %v1705, %v1329
      %v1707 = vmax.f32 %v1706, %v1333
      %v1708 = vmax.f32 %v1707, %v1339
      %v1709 = vmax.f32 %v1708, %v1343
      %v1710 = vmax.f32 %v1709, %v1349
      %v1711 = vmax.f32 %v1710, %v1353
      %v1712 = vrot.slane %v1711, 4
      %v1713 = vmax.f32 %v1711, %v1712
      %v1714 = vrot.slane %v1713, 2
      %v1715 = vmax.f32 %v1713, %v1714
      %v1716 = vrot.slane %v1715, 1
      %v1717 = vmax.f32 %v1715, %v1716
      %v1718 = vmax.f32 %v1281, %v1285
      %v1719 = vmax.f32 %v1718, %v1291
      %v1720 = vmax.f32 %v1719, %v1295
      %v1721 = vmax.f32 %v1720, %v1301
      %v1722 = vmax.f32 %v1721, %v1305
      %v1723 = vmax.f32 %v1722, %v1311
      %v1724 = vmax.f32 %v1723, %v1315
      %v1725 = vmax.f32 %v1724, %v1321
      %v1726 = vmax.f32 %v1725, %v1325
      %v1727 = vmax.f32 %v1726, %v1331
      %v1728 = vmax.f32 %v1727, %v1335
      %v1729 = vmax.f32 %v1728, %v1341
      %v1730 = vmax.f32 %v1729, %v1345
      %v1731 = vmax.f32 %v1730, %v1351
      %v1732 = vmax.f32 %v1731, %v1355
      %v1733 = vrot.slane %v1732, 4
      %v1734 = vmax.f32 %v1732, %v1733
      %v1735 = vrot.slane %v1734, 2
      %v1736 = vmax.f32 %v1734, %v1735
      %v1737 = vrot.slane %v1736, 1
      %v1738 = vmax.f32 %v1736, %v1737
      %v1739 = vmax.f32 %v1392, %v1396
      %v1740 = vmax.f32 %v1739, %v1402
      %v1741 = vmax.f32 %v1740, %v1406
      %v1742 = vmax.f32 %v1741, %v1412
      %v1743 = vmax.f32 %v1742, %v1416
      %v1744 = vmax.f32 %v1743, %v1422
      %v1745 = vmax.f32 %v1744, %v1426
      %v1746 = vmax.f32 %v1745, %v1432
      %v1747 = vmax.f32 %v1746, %v1436
      %v1748 = vmax.f32 %v1747, %v1442
      %v1749 = vmax.f32 %v1748, %v1446
      %v1750 = vmax.f32 %v1749, %v1452
      %v1751 = vmax.f32 %v1750, %v1456
      %v1752 = vmax.f32 %v1751, %v1462
      %v1753 = vmax.f32 %v1752, %v1466
      %v1754 = vrot.slane %v1753, 4
      %v1755 = vmax.f32 %v1753, %v1754
      %v1756 = vrot.slane %v1755, 2
      %v1757 = vmax.f32 %v1755, %v1756
      %v1758 = vrot.slane %v1757, 1
      %v1759 = vmax.f32 %v1757, %v1758
      %v1760 = vmax.f32 %v1394, %v1398
      %v1761 = vmax.f32 %v1760, %v1404
      %v1762 = vmax.f32 %v1761, %v1408
      %v1763 = vmax.f32 %v1762, %v1414
      %v1764 = vmax.f32 %v1763, %v1418
      %v1765 = vmax.f32 %v1764, %v1424
      %v1766 = vmax.f32 %v1765, %v1428
      %v1767 = vmax.f32 %v1766, %v1434
      %v1768 = vmax.f32 %v1767, %v1438
      %v1769 = vmax.f32 %v1768, %v1444
      %v1770 = vmax.f32 %v1769, %v1448
      %v1771 = vmax.f32 %v1770, %v1454
      %v1772 = vmax.f32 %v1771, %v1458
      %v1773 = vmax.f32 %v1772, %v1464
      %v1774 = vmax.f32 %v1773, %v1468
      %v1775 = vrot.slane %v1774, 4
      %v1776 = vmax.f32 %v1774, %v1775
      %v1777 = vrot.slane %v1776, 2
      %v1778 = vmax.f32 %v1776, %v1777
      %v1779 = vrot.slane %v1778, 1
      %v1780 = vmax.f32 %v1778, %v1779
      %v1781 = vmax.f32 %v1505, %v1509
      %v1782 = vmax.f32 %v1781, %v1515
      %v1783 = vmax.f32 %v1782, %v1519
      %v1784 = vmax.f32 %v1783, %v1525
      %v1785 = vmax.f32 %v1784, %v1529
      %v1786 = vmax.f32 %v1785, %v1535
      %v1787 = vmax.f32 %v1786, %v1539
      %v1788 = vmax.f32 %v1787, %v1545
      %v1789 = vmax.f32 %v1788, %v1549
      %v1790 = vmax.f32 %v1789, %v1555
      %v1791 = vmax.f32 %v1790, %v1559
      %v1792 = vmax.f32 %v1791, %v1565
      %v1793 = vmax.f32 %v1792, %v1569
      %v1794 = vmax.f32 %v1793, %v1575
      %v1795 = vmax.f32 %v1794, %v1579
      %v1796 = vrot.slane %v1795, 4
      %v1797 = vmax.f32 %v1795, %v1796
      %v1798 = vrot.slane %v1797, 2
      %v1799 = vmax.f32 %v1797, %v1798
      %v1800 = vrot.slane %v1799, 1
      %v1801 = vmax.f32 %v1799, %v1800
      %v1802 = vmax.f32 %v1507, %v1511
      %v1803 = vmax.f32 %v1802, %v1517
      %v1804 = vmax.f32 %v1803, %v1521
      %v1805 = vmax.f32 %v1804, %v1527
      %v1806 = vmax.f32 %v1805, %v1531
      %v1807 = vmax.f32 %v1806, %v1537
      %v1808 = vmax.f32 %v1807, %v1541
      %v1809 = vmax.f32 %v1808, %v1547
      %v1810 = vmax.f32 %v1809, %v1551
      %v1811 = vmax.f32 %v1810, %v1557
      %v1812 = vmax.f32 %v1811, %v1561
      %v1813 = vmax.f32 %v1812, %v1567
      %v1814 = vmax.f32 %v1813, %v1571
      %v1815 = vmax.f32 %v1814, %v1577
      %v1816 = vmax.f32 %v1815, %v1581
      %v1817 = vrot.slane %v1816, 4
      %v1818 = vmax.f32 %v1816, %v1817
      %v1819 = vrot.slane %v1818, 2
      %v1820 = vmax.f32 %v1818, %v1819
      %v1821 = vrot.slane %v1820, 1
      %v1822 = vmax.f32 %v1820, %v1821
      %v1823 = vmax.f32 %v1618, %v1622
      %v1824 = vmax.f32 %v1823, %v1628
      %v1825 = vmax.f32 %v1824, %v1632
      %v1826 = vmax.f32 %v1825, %v1638
      %v1827 = vmax.f32 %v1826, %v1642
      %v1828 = vmax.f32 %v1827, %v1648
      %v1829 = vmax.f32 %v1828, %v1652
      %v1830 = vmax.f32 %v1829, %v1658
      %v1831 = vmax.f32 %v1830, %v1662
      %v1832 = vmax.f32 %v1831, %v1668
      %v1833 = vmax.f32 %v1832, %v1672
      %v1834 = vmax.f32 %v1833, %v1678
      %v1835 = vmax.f32 %v1834, %v1682
      %v1836 = vmax.f32 %v1835, %v1688
      %v1837 = vmax.f32 %v1836, %v1692
      %v1838 = vrot.slane %v1837, 4
      %v1839 = vmax.f32 %v1837, %v1838
      %v1840 = vrot.slane %v1839, 2
      %v1841 = vmax.f32 %v1839, %v1840
      %v1842 = vrot.slane %v1841, 1
      %v1843 = vmax.f32 %v1841, %v1842
      %v1844 = vmax.f32 %v1620, %v1624
      %v1845 = vmax.f32 %v1844, %v1630
      %v1846 = vmax.f32 %v1845, %v1634
      %v1847 = vmax.f32 %v1846, %v1640
      %v1848 = vmax.f32 %v1847, %v1644
      %v1849 = vmax.f32 %v1848, %v1650
      %v1850 = vmax.f32 %v1849, %v1654
      %v1851 = vmax.f32 %v1850, %v1660
      %v1852 = vmax.f32 %v1851, %v1664
      %v1853 = vmax.f32 %v1852, %v1670
      %v1854 = vmax.f32 %v1853, %v1674
      %v1855 = vmax.f32 %v1854, %v1680
      %v1856 = vmax.f32 %v1855, %v1684
      %v1857 = vmax.f32 %v1856, %v1690
      %v1858 = vmax.f32 %v1857, %v1694
      %v1859 = vrot.slane %v1858, 4
      %v1860 = vmax.f32 %v1858, %v1859
      %v1861 = vrot.slane %v1860, 2
      %v1862 = vmax.f32 %v1860, %v1861
      %v1863 = vrot.slane %v1862, 1
      %v1864 = vmax.f32 %v1862, %v1863
      %v1873 = vcombine.low %v1717, %v1738
      %v1874 = vcombine.low %v1759, %v1780
      %v1875 = vcombine.low %v1801, %v1822
      %v1876 = vcombine.low %v1843, %v1864
      %v1878 = vunpack.c.l.s4 1966171168
      %v1879 = vunpack.c.0.s8 %v1878
      %v1880 = vlaneseq
      %v1881 = vshrl.u32 %v1880, 7
      %v1882 = vsub.s32 %v1879, %v1881
      %v1883 = vrot.slane %v1873, %v1882
      %v1885 = vunpack.c.l.s4 1966171168
      %v1886 = vunpack.c.0.s8 %v1885
      %v1887 = vlaneseq
      %v1888 = vshrl.u32 %v1887, 7
      %v1889 = vsub.s32 %v1886, %v1888
      %v1890 = vrot.slane %v1874, %v1889
      %v1892 = vunpack.c.l.s4 1966171168
      %v1893 = vunpack.c.0.s8 %v1892
      %v1894 = vlaneseq
      %v1895 = vshrl.u32 %v1894, 7
      %v1896 = vsub.s32 %v1893, %v1895
      %v1897 = vrot.slane %v1875, %v1896
      %v1899 = vunpack.c.l.s4 1966171168
      %v1900 = vunpack.c.0.s8 %v1899
      %v1901 = vlaneseq
      %v1902 = vshrl.u32 %v1901, 7
      %v1903 = vsub.s32 %v1900, %v1902
      %v1904 = vrot.slane %v1876, %v1903
      %v1905 = vcombine.low %v1883, %v1890
      %v1906 = vcombine.low %v1897, %v1904
      %v1908 = vunpack.c.l.s4 1966171168
      %v1909 = vunpack.c.0.s8 %v1908
      %v1910 = vlaneseq
      %v1911 = vshrl.u32 %v1910, 7
      %v1912 = vsub.s32 %v1909, %v1911
      %v1913 = vrot.slane %v1905, %v1912
      %v1915 = vunpack.c.l.s4 1966171168
      %v1916 = vunpack.c.0.s8 %v1915
      %v1917 = vlaneseq
      %v1918 = vshrl.u32 %v1917, 7
      %v1919 = vsub.s32 %v1916, %v1918
      %v1920 = vrot.slane %v1906, %v1919
      %v1921 = vcombine.low %v1913, %v1920
      %v1923 = vmax.f32 %v1696, %v1921
      %1924 = vst [vmem:[%s304] sm:$0xff] %v1923
      // Predicated region
      $region53: #{pointnet_feat.1} parent=47 // pred_check
        %p1925 = pneg %p306
      $region54: #{pointnet_feat.1} parent=47 // pred_check_branch
        %1927 = sbr.rel (%p1925) target = $region56
      $region55: #{pointnet_feat.1} parent=47 // pred_region
        %v1928 = vld [vmem:[%s304] sm:$0xff]
        %v1929 = vld [vmem:[%s6] sm:$0xff]
        %v1930 = vadd.f32 %v1928, %v1929
        %1931 = vst [vmem:[%s304] sm:$0xff] %v1930
      $region56: #{pointnet_feat.1} parent=47 // pred_fallthru
        _
      %p1932 = scmp.lt.s32.totalorder %s22, 1
      %s1933 = scalar_select %p1932, %s22, 1
      %s1934 = smul.addr %s1933, 8
      %s1935 = scalar_lea.vmem %s7, %s1934
      // Predicated region
      $region57: #{pointnet_feat.1} parent=47 // pred_check
        %p1936 = pneg %p202
      $region58: #{pointnet_feat.1} parent=47 // pred_check_branch
        %1938 = sbr.rel (%p1936) target = $region60
      $region59: #{pointnet_feat.1} parent=47 // pred_region
        _
      $region60: #{pointnet_feat.1} parent=47 // pred_fallthru
        _
    $region48: #{pointnet_feat.1} parent=5 // pred_fallthru
      _
    %p1939 = scmp.le.s32.totalorder 2, %s13
    // Predicated region
    $region61: #{pointnet_feat.1} parent=5 // pred_check
      %p1940 = pneg %p1939
    $region62: #{pointnet_feat.1} parent=5 // pred_check_branch
      %1942 = sbr.rel (%p1940) target = $region64
    $region63: #{pointnet_feat.1} parent=5 // pred_region
      %s1943 = ssub.s32 %s13, 2
      // Predicated region
      $region65: #{pointnet_feat.1} parent=63 // pred_check
        %p1944 = pneg %p208
      $region66: #{pointnet_feat.1} parent=63 // pred_check_branch
        %1946 = sbr.rel (%p1944) target = $region68
      $region67: #{pointnet_feat.1} parent=63 // pred_region
        %p1947 = scmp.lt.s32.totalorder %s24, 1
        %s1948 = scalar_select %p1947, %s24, 1
        %s1949 = smul.addr %s1948, 8
        %s1950 = scalar_lea.vmem %s7, %s1949
      $region68: #{pointnet_feat.1} parent=63 // pred_fallthru
        _
    $region64: #{pointnet_feat.1} parent=5 // pred_fallthru
      _
  $region6: #{pointnet_feat.1} parent=0 // loop_footer
    %s17 = sadd.s32 1, %s13
  $region7: #{pointnet_feat.1} parent=0 // loop_footer_branch
    %12 = sbr.rel target = $region3
  $region8: #{pointnet_feat.1} parent=0 // loop_exit
    _

</llo_original>
